<compile_context>
chip_gen: v5e
topology: v5e:2x2
jax: 0.10.0
libtpu: 0.0.40
codegen_flags: <defaults>
</compile_context>

<pallas_src>
import math
import functools

import numpy as np
import jax
import jax.numpy as jnp
from jax.experimental import pallas as pl
from jax.experimental.pallas import tpu as pltpu


# ------------------------------- Pallas kernel ------------------------------ #

def _bottle2neck_kernel(x_ref, mask_ref, w1_ref, b1_ref, wc_ref, bc_ref,
                        w3_ref, b3_ref, o_ref,
                        y1_ref, patches_ref, acc_ref, *,
                        W, wpad, scale, m_block):
    """Fused Bottle2neck forward, channels-major, B_TILE images per grid step.

    Shapes (M = B_TILE * H * W on the lane axis, wpad = width rounded to 8):
      x_ref   : [Cin, M]                         input block (also the residual)
      mask_ref: [16, M]                          0/1 validity mask per 3x3 tap (rows 0..8)
      w1_ref  : [scale*wpad, Cin]                conv1 weight (BN1 folded, zero-padded rows)
      b1_ref  : [scale*wpad, 1]
      wc_ref  : [num_scales, wpad, 9*wpad]       im2col 3x3 weights (BN folded, padded)
      bc_ref  : [num_scales, wpad, 1]
      w3_ref  : [scale, Cout, wpad]              conv3 weight split per group (BN3 folded)
      b3_ref  : [Cout, 1]
      o_ref   : [Cout, M]
      y1_ref  : VMEM [scale*wpad, M] f32         conv1 output
      patches_ref: VMEM [9*wpad, M] f32          im2col staging (8-aligned tap rows)
      acc_ref : VMEM [Cout, M] f32               conv3 accumulator
    """
    num_scales = max(1, scale - 1)
    mdt = w1_ref.dtype          # matmul operand dtype (f32, or bf16 if pre-cast)

    def mm(w, a):
        # MXU matmul, f32 accumulation.  Weights are already in `mdt`.
        return jnp.dot(w, a.astype(mdt), preferred_element_type=jnp.float32)

    # conv1 (1x1) + folded bn1 + relu, fed directly from x_ref (x not kept live).
    y1_ref[...] = jnp.maximum(mm(w1_ref[...], x_ref[...]) + b1_ref[...], 0.0)

    # conv3 partial for the pass-through group FIRST: it only depends on y1, so
    # the scheduler can overlap it with branch 0's rolls/masks.
    if scale > 1:
        acc_ref[...] = mm(w3_ref[num_scales],
                          y1_ref[num_scales * wpad:scale * wpad, :])
    else:
        acc_ref[...] = jnp.zeros_like(acc_ref)

    # Hierarchical 3x3 branches (is_first == False => sp = sp + spx[i] for i>0).
    sp = None
    for i in range(num_scales):
        spx_i = y1_ref[i * wpad:(i + 1) * wpad, :]            # [wpad, M]
        sp_in = spx_i if i == 0 else sp + spx_i               # no zero-add on branch 0

        # Build the im2col patch matrix [9*wpad, M] in VMEM scratch via lane
        # rolls (XLU) + 0/1 boundary masks; every tap lands at an 8-aligned
        # row offset so no sublane relayout is needed.  The masks also zero any
        # roll that crosses an image boundary inside the batched lane axis.
        t = 0
        for kh in (-1, 0, 1):
            for kw in (-1, 0, 1):
                if kh == 0 and kw == 0:
                    tap = sp_in
                else:
                    shift = (-(kh * W + kw)) % m_block
                    tap = (pltpu.roll(sp_in, shift=shift, axis=1)
                           * mask_ref[t:t + 1, :])
                patches_ref[t * wpad:(t + 1) * wpad, :] = tap
                t += 1

        # One K = 9*wpad matmul per branch + folded bn + relu.
        sp = jnp.maximum(mm(wc_ref[i], patches_ref[...]) + bc_ref[i], 0.0)

        # conv3 partial for this group, accumulated immediately (no final cat).
        acc_ref[...] += mm(w3_ref[i], sp)

    # Epilogue: folded bn3 bias + residual (x re-read from VMEM) + relu.
    o_ref[...] = jnp.maximum(
        acc_ref[...] + b3_ref[...] + x_ref[...].astype(jnp.float32),
        0.0).astype(o_ref.dtype)


# ------------------------------ Kernel wrapper ------------------------------ #

def _make_tap_masks(H, W, imgs_per_block):
    """[16, imgs_per_block*H*W] f32 masks (rows 0..8 used): 1 where the 3x3 tap
    (kh, kw) is inside the image, 0 where zero-padding applies.  Tiled per image
    so rolls across image boundaries on the batched lane axis are zeroed."""
    HW = H * W
    hh = np.arange(HW) // W
    ww = np.arange(HW) % W
    m = np.zeros((16, imgs_per_block * HW), np.float32)
    t = 0
    for kh in (-1, 0, 1):
        for kw in (-1, 0, 1):
            valid = ((hh + kh >= 0) & (hh + kh < H) &
                     (ww + kw >= 0) & (ww + kw < W)).astype(np.float32)
            m[t, :] = np.tile(valid, imgs_per_block)
            t += 1
    return jnp.asarray(m)


def _pick_b_tile(n, target=8):
    """Largest divisor of n that is <= target while keeping >= 2 grid steps
    (so both v7x TensorCores get work); 1 if n == 1."""
    if n <= 1:
        return 1
    best = 1
    for d in range(1, n + 1):
        if n % d == 0 and d <= target and n // d >= 2:
            best = max(best, d)
    return best


def _bcast_spec(shape):
    zeros = (0,) * len(shape)
    return pl.BlockSpec(shape, lambda n: zeros)


def bottle2neck_forward(x_nchw, kparams, *, scale, wpad, b_tile=None):
    """Pallas implementation of Bottle2neck.forward (stride=1, no downsample/SE)."""
    N, Cin, H, W = x_nchw.shape
    Cout = kparams["b3"].shape[0]
    if Cin != Cout:
        raise ValueError(
            "residual add requires inplanes == outplanes (downsample branch "
            f"not implemented); got inplanes={Cin}, outplanes={Cout}")
    HW = H * W
    if b_tile is None:
        b_tile = _pick_b_tile(N)
    if N % b_tile != 0:
        raise ValueError(f"batch {N} not divisible by b_tile {b_tile}")
    m_block = b_tile * HW
    assert m_block % 128 == 0 and Cin % 8 == 0, (m_block, Cin)

    # Channels-major layout with the batch concatenated along the lane axis.
    x_cm = jnp.transpose(x_nchw.reshape(N, Cin, HW), (1, 0, 2)).reshape(Cin, N * HW)
    masks = _make_tap_masks(H, W, b_tile)

    kern = functools.partial(_bottle2neck_kernel, W=W, wpad=wpad, scale=scale,
                             m_block=m_block)
    out_cm = pl.pallas_call(
        kern,
        grid=(N // b_tile,),
        in_specs=[
            pl.BlockSpec((Cin, m_block), lambda n: (0, n)),
            _bcast_spec(masks.shape),
            _bcast_spec(kparams["w1"].shape),
            _bcast_spec(kparams["b1"].shape),
            _bcast_spec(kparams["wc"].shape),
            _bcast_spec(kparams["bc"].shape),
            _bcast_spec(kparams["w3"].shape),
            _bcast_spec(kparams["b3"].shape),
        ],
        out_specs=pl.BlockSpec((Cout, m_block), lambda n: (0, n)),
        out_shape=jax.ShapeDtypeStruct((Cout, N * HW), x_nchw.dtype),
        scratch_shapes=[
            pltpu.VMEM((kparams["w1"].shape[0], m_block), jnp.float32),  # y1
            pltpu.VMEM((9 * wpad, m_block), jnp.float32),                # patches
            pltpu.VMEM((Cout, m_block), jnp.float32),                    # conv3 acc
        ],
        compiler_params=pltpu.CompilerParams(
            dimension_semantics=("parallel",)),
    )(x_cm, masks, kparams["w1"], kparams["b1"], kparams["wc"], kparams["bc"],
      kparams["w3"], kparams["b3"])

    out = jnp.transpose(out_cm.reshape(Cout, N, HW), (1, 0, 2))
    return out.reshape(N, Cout, H, W)


# --------------------------- Parameter preparation --------------------------- #

def init_params(key, inplanes, planes, *, base_width=26, scale=4, cardinality=1,
                expansion=4, eps=1e-5):
    """Random parameters in (near-)torch layouts, with eval-mode BN pre-folded
    into per-channel (scale, bias)."""
    width = int(math.floor(planes * (base_width / 64.0))) * cardinality
    outplanes = planes * expansion
    num_scales = max(1, scale - 1)

    def folded_bn(k, c):
        kg, kb, km, kv = jax.random.split(k, 4)
        gamma = jax.random.uniform(kg, (c,), jnp.float32, 0.5, 1.5)
        beta = 0.1 * jax.random.normal(kb, (c,), jnp.float32)
        mean = 0.1 * jax.random.normal(km, (c,), jnp.float32)
        var = jax.random.uniform(kv, (c,), jnp.float32, 0.5, 1.5)
        s = gamma / jnp.sqrt(var + eps)
        b = beta - mean * s
        return s, b

    keys = jax.random.split(key, 4 + num_scales)
    params = {}
    # conv1: torch [width*scale, inplanes, 1, 1] -> stored [inplanes, width*scale]
    params["w1"] = (jax.random.normal(keys[0], (inplanes, width * scale), jnp.float32)
                    / math.sqrt(inplanes))
    params["s1"], params["b1"] = folded_bn(keys[1], width * scale)
    # convs[i]: torch [width, width, 3, 3] -> stored [3, 3, width_in, width_out]
    params["wc"], params["sc"], params["bc"] = [], [], []
    for i in range(num_scales):
        kw_, kbn = jax.random.split(keys[2 + i])
        params["wc"].append(jax.random.normal(kw_, (3, 3, width, width), jnp.float32)
                            / math.sqrt(9 * width))
        s, b = folded_bn(kbn, width)
        params["sc"].append(s)
        params["bc"].append(b)
    # conv3: torch [outplanes, width*scale, 1, 1] -> stored [width*scale, outplanes]
    params["w3"] = (jax.random.normal(keys[2 + num_scales],
                                      (width * scale, outplanes), jnp.float32)
                    / math.sqrt(width * scale))
    params["s3"], params["b3"] = folded_bn(keys[3 + num_scales], outplanes)
    return params, width, scale


def prep_kernel_params(raw, *, width, scale, matmul_dtype=jnp.float32):
    """Kernel layouts: channels-major weights with BN scale folded in, width
    zero-padded to a multiple of 8, biases as [C,1] columns, 3x3 weights in
    im2col layout, and conv3 split per group.  Pass matmul_dtype=jnp.bfloat16
    on v6e/v7x to pre-cast the matmul weights once; keep f32 on v5e."""
    num_scales = max(1, scale - 1)
    wpad = ((width + 7) // 8) * 8
    Cin = raw["w1"].shape[0]
    Cout = raw["w3"].shape[1]

    # conv1 (+bn1): [Cin, width*scale] -> [scale*wpad, Cin] with zero-padded rows.
    w1_f = (raw["w1"] * raw["s1"][None, :]).T                    # [width*scale, Cin]
    w1_p = jnp.zeros((scale * wpad, Cin), jnp.float32)
    b1_p = jnp.zeros((scale * wpad, 1), jnp.float32)
    for g in range(scale):
        w1_p = w1_p.at[g * wpad:g * wpad + width, :].set(
            w1_f[g * width:(g + 1) * width, :])
        b1_p = b1_p.at[g * wpad:g * wpad + width, 0].set(
            raw["b1"][g * width:(g + 1) * width])

    # 3x3 convs (+bn): [3,3,ci,co] -> im2col [wpad, 9*wpad] (tap-major columns).
    wc_l, bc_l = [], []
    for i in range(num_scales):
        w = jnp.transpose(raw["wc"][i], (3, 0, 1, 2))            # [co, kh, kw, ci]
        w = w * raw["sc"][i][:, None, None, None]
        w_p = jnp.zeros((wpad, 3, 3, wpad), jnp.float32).at[:width, :, :, :width].set(w)
        wc_l.append(w_p.reshape(wpad, 9 * wpad))
        bc_l.append(jnp.zeros((wpad, 1), jnp.float32).at[:width, 0].set(raw["bc"][i]))
    wc_p = jnp.stack(wc_l)                                       # [num_scales, wpad, 9*wpad]
    bc_p = jnp.stack(bc_l)                                       # [num_scales, wpad, 1]

    # conv3 (+bn3): [width*scale, Cout] -> per-group [scale, Cout, wpad].
    w3_f = (raw["w3"] * raw["s3"][None, :]).T                    # [Cout, width*scale]
    w3_p = jnp.zeros((scale, Cout, wpad), jnp.float32)
    for g in range(scale):
        w3_p = w3_p.at[g, :, :width].set(w3_f[:, g * width:(g + 1) * width])
    b3_p = raw["b3"][:, None]                                    # [Cout, 1]

    kp = {"w1": w1_p.astype(matmul_dtype), "b1": b1_p,
          "wc": wc_p.astype(matmul_dtype), "bc": bc_p,
          "w3": w3_p.astype(matmul_dtype), "b3": b3_p}
    return kp, wpad


# ------------------------------ Reference (JAX) ------------------------------ #

def _ref_forward(x_nchw, params, *, scale, width):
    x = jnp.transpose(x_nchw, (0, 2, 3, 1)).astype(jnp.float32)
    N, H, W, _ = x.shape
    out = jnp.einsum("nhwc,cd->nhwd", x, params["w1"]) * params["s1"] + params["b1"]
    out = jnp.maximum(out, 0.0)
    spx = [out[..., i * width:(i + 1) * width] for i in range(scale)]
    spo = []
    sp = None
    for i in range(max(1, scale - 1)):
        inp = spx[i] if i == 0 else sp + spx[i]
        xp = jnp.pad(inp, ((0, 0), (1, 1), (1, 1), (0, 0)))
        acc = jnp.zeros((N, H, W, width), jnp.float32)
        for dh in range(3):
            for dw in range(3):
                acc = acc + jnp.einsum("nhwc,cd->nhwd",
                                       xp[:, dh:dh + H, dw:dw + W, :],
                                       params["wc"][i][dh, dw])
        sp = jnp.maximum(acc * params["sc"][i] + params["bc"][i], 0.0)
        spo.append(sp)
    if scale > 1:
        spo.append(spx[-1])
    outc = jnp.concatenate(spo, axis=-1)
    y = jnp.einsum("nhwc,cd->nhwd", outc, params["w3"]) * params["s3"] + params["b3"] + x
    y = jnp.maximum(y, 0.0)
    return jnp.transpose(y, (0, 3, 1, 2))


# ----------------------------------- Main ----------------------------------- #

if __name__ == "__main__":
    key = jax.random.PRNGKey(0)
    kx1, kpar, kx2 = jax.random.split(key, 3)

    inplanes, planes, scale_cfg = 64, 16, 4          # outplanes = 64 == inplanes
    H, W = 16, 16

    raw, width, scale_cfg = init_params(kpar, inplanes, planes, scale=scale_cfg)
    kparams, wpad = prep_kernel_params(raw, width=width, scale=scale_cfg)

    fwd = jax.jit(functools.partial(bottle2neck_forward, scale=scale_cfg, wpad=wpad))

    # Case 1: N=2 -> b_tile=1, 2 grid steps (keeps both v7x TensorCores busy).
    x1 = jax.random.normal(kx1, (2, inplanes, H, W), jnp.float32)
    out1 = jax.block_until_ready(fwd(x1, kparams))
    ref1 = jax.block_until_ready(_ref_forward(x1, raw, scale=scale_cfg, width=width))
    assert out1.shape == (2, planes * 4, H, W), out1.shape
    assert jnp.allclose(out1, ref1, atol=2e-3, rtol=2e-3), \
        float(jnp.max(jnp.abs(out1 - ref1)))

    # Case 2: N=8 -> b_tile=4 images per grid step on the lane axis; verifies the
    # cross-image roll masking of the batched lane layout against the reference.
    x2 = jax.random.normal(kx2, (8, inplanes, H, W), jnp.float32)
    out2 = jax.block_until_ready(fwd(x2, kparams))
    ref2 = jax.block_until_ready(_ref_forward(x2, raw, scale=scale_cfg, width=width))
    assert out2.shape == (8, planes * 4, H, W), out2.shape
    assert jnp.allclose(out2, ref2, atol=2e-3, rtol=2e-3), \
        float(jnp.max(jnp.abs(out2 - ref2)))

    print("KERNEL_OK")
</pallas_src>

<mosaic_0001>
module attributes {stable_mosaic.version = 11 : i64} {
  func.func @_bottle2neck_kernel(%arg0: i32, %arg1: memref<64x256xf32, #tpu.memory_space<vmem>>, %arg2: memref<16x256xf32, #tpu.memory_space<vmem>>, %arg3: memref<32x64xf32, #tpu.memory_space<vmem>>, %arg4: memref<32x1xf32, #tpu.memory_space<vmem>>, %arg5: memref<3x8x72xf32, #tpu.memory_space<vmem>>, %arg6: memref<3x8x1xf32, #tpu.memory_space<vmem>>, %arg7: memref<4x64x8xf32, #tpu.memory_space<vmem>>, %arg8: memref<64x1xf32, #tpu.memory_space<vmem>>, %arg9: memref<64x256xf32, #tpu.memory_space<vmem>>, %arg10: memref<32x256xf32, #tpu.memory_space<vmem>>, %arg11: memref<72x256xf32, #tpu.memory_space<vmem>>, %arg12: memref<64x256xf32, #tpu.memory_space<vmem>>) attributes {dimension_semantics = [#tpu.dimension_semantics<parallel>], iteration_bounds = array<i64: 2>, scalar_prefetch = 0 : i64, scratch_operands = 3 : i64, tpu.core_type = #tpu.core_type<tc>, window_params = [{transform_indices = @transform_0, window_bounds = array<i64: 64, 256>}, {pipeline_mode = #tpu.pipeline_mode<synchronous>, transform_indices = @transform_1, window_bounds = array<i64: 16, 256>}, {pipeline_mode = #tpu.pipeline_mode<synchronous>, transform_indices = @transform_2, window_bounds = array<i64: 32, 64>}, {pipeline_mode = #tpu.pipeline_mode<synchronous>, transform_indices = @transform_3, window_bounds = array<i64: 32, 1>}, {pipeline_mode = #tpu.pipeline_mode<synchronous>, transform_indices = @transform_4, window_bounds = array<i64: 3, 8, 72>}, {pipeline_mode = #tpu.pipeline_mode<synchronous>, transform_indices = @transform_5, window_bounds = array<i64: 3, 8, 1>}, {pipeline_mode = #tpu.pipeline_mode<synchronous>, transform_indices = @transform_6, window_bounds = array<i64: 4, 64, 8>}, {pipeline_mode = #tpu.pipeline_mode<synchronous>, transform_indices = @transform_7, window_bounds = array<i64: 64, 1>}, {transform_indices = @transform_8, window_bounds = array<i64: 64, 256>}]} {
    %c0 = arith.constant 0 : index
    %c0_0 = arith.constant 0 : index
    %0 = vector.load %arg3[%c0, %c0_0] : memref<32x64xf32, #tpu.memory_space<vmem>>, vector<32x64xf32>
    %c0_1 = arith.constant 0 : index
    %c0_2 = arith.constant 0 : index
    %1 = vector.load %arg1[%c0_1, %c0_2] : memref<64x256xf32, #tpu.memory_space<vmem>>, vector<64x256xf32>
    %cst = arith.constant dense<0.000000e+00> : vector<32x256xf32>
    %2 = tpu.matmul %0, %1, %cst {dimension_numbers = #tpu.dot_dimension_numbers<[1], [0], [0], [1], [0, 0, 1, 1], [], []>} : vector<32x64xf32>, vector<64x256xf32>, vector<32x256xf32> -> vector<32x256xf32>
    %c0_3 = arith.constant 0 : index
    %c0_4 = arith.constant 0 : index
    %3 = vector.load %arg4[%c0_3, %c0_4] : memref<32x1xf32, #tpu.memory_space<vmem>>, vector<32x1xf32>
    %4 = vector.broadcast %3 : vector<32x1xf32> to vector<32x256xf32>
    %5 = arith.addf %2, %4 : vector<32x256xf32>
    %cst_5 = arith.constant 0.000000e+00 : f32
    %6 = vector.broadcast %cst_5 : f32 to vector<32x256xf32>
    %7 = arith.maximumf %5, %6 : vector<32x256xf32>
    %c0_6 = arith.constant 0 : index
    %c0_7 = arith.constant 0 : index
    %8 = vector.load %arg10[%c0_6, %c0_7] : memref<32x256xf32, #tpu.memory_space<vmem>>, vector<32x256xf32>
    tpu.vector_store %arg10[%c0_6, %c0_7], %7 {strides = array<i32>} : memref<32x256xf32, #tpu.memory_space<vmem>>, vector<32x256xf32>,
    %c3 = arith.constant 3 : index
    %c0_8 = arith.constant 0 : index
    %c0_9 = arith.constant 0 : index
    %9 = vector.load %arg7[%c3, %c0_8, %c0_9] : memref<4x64x8xf32, #tpu.memory_space<vmem>>, vector<1x64x8xf32>
    %10 = vector.shape_cast %9 : vector<1x64x8xf32> to vector<64x8xf32>
    %c24 = arith.constant 24 : index
    %c0_10 = arith.constant 0 : index
    %11 = vector.load %arg10[%c24, %c0_10] : memref<32x256xf32, #tpu.memory_space<vmem>>, vector<8x256xf32>
    %cst_11 = arith.constant dense<0.000000e+00> : vector<64x256xf32>
    %12 = tpu.matmul %10, %11, %cst_11 {dimension_numbers = #tpu.dot_dimension_numbers<[1], [0], [0], [1], [0, 0, 1, 1], [], []>} : vector<64x8xf32>, vector<8x256xf32>, vector<64x256xf32> -> vector<64x256xf32>
    %c0_12 = arith.constant 0 : index
    %c0_13 = arith.constant 0 : index
    %13 = vector.load %arg12[%c0_12, %c0_13] : memref<64x256xf32, #tpu.memory_space<vmem>>, vector<64x256xf32>
    tpu.vector_store %arg12[%c0_12, %c0_13], %12 {strides = array<i32>} : memref<64x256xf32, #tpu.memory_space<vmem>>, vector<64x256xf32>,
    %c0_14 = arith.constant 0 : index
    %c0_15 = arith.constant 0 : index
    %14 = vector.load %arg10[%c0_14, %c0_15] : memref<32x256xf32, #tpu.memory_space<vmem>>, vector<8x256xf32>
    %c17_i32 = arith.constant 17 : i32
    %15 = tpu.dynamic_rotate %14 by %c17_i32 dim 1 : vector<8x256xf32>, i32 -> vector<8x256xf32>
    %c0_16 = arith.constant 0 : index
    %c0_17 = arith.constant 0 : index
    %16 = vector.load %arg2[%c0_16, %c0_17] : memref<16x256xf32, #tpu.memory_space<vmem>>, vector<1x256xf32>
    %17 = vector.broadcast %16 : vector<1x256xf32> to vector<8x256xf32>
    %18 = arith.mulf %15, %17 : vector<8x256xf32>
    %c0_18 = arith.constant 0 : index
    %c0_19 = arith.constant 0 : index
    %19 = vector.load %arg11[%c0_18, %c0_19] : memref<72x256xf32, #tpu.memory_space<vmem>>, vector<8x256xf32>
    tpu.vector_store %arg11[%c0_18, %c0_19], %18 {strides = array<i32>} : memref<72x256xf32, #tpu.memory_space<vmem>>, vector<8x256xf32>,
    %c16_i32 = arith.constant 16 : i32
    %20 = tpu.dynamic_rotate %14 by %c16_i32 dim 1 : vector<8x256xf32>, i32 -> vector<8x256xf32>
    %c1 = arith.constant 1 : index
    %c0_20 = arith.constant 0 : index
    %21 = vector.load %arg2[%c1, %c0_20] : memref<16x256xf32, #tpu.memory_space<vmem>>, vector<1x256xf32>
    %22 = vector.broadcast %21 : vector<1x256xf32> to vector<8x256xf32>
    %23 = arith.mulf %20, %22 : vector<8x256xf32>
    %c8 = arith.constant 8 : index
    %c0_21 = arith.constant 0 : index
    %24 = vector.load %arg11[%c8, %c0_21] : memref<72x256xf32, #tpu.memory_space<vmem>>, vector<8x256xf32>
    tpu.vector_store %arg11[%c8, %c0_21], %23 {strides = array<i32>} : memref<72x256xf32, #tpu.memory_space<vmem>>, vector<8x256xf32>,
    %c15_i32 = arith.constant 15 : i32
    %25 = tpu.dynamic_rotate %14 by %c15_i32 dim 1 : vector<8x256xf32>, i32 -> vector<8x256xf32>
    %c2 = arith.constant 2 : index
    %c0_22 = arith.constant 0 : index
    %26 = vector.load %arg2[%c2, %c0_22] : memref<16x256xf32, #tpu.memory_space<vmem>>, vector<1x256xf32>
    %27 = vector.broadcast %26 : vector<1x256xf32> to vector<8x256xf32>
    %28 = arith.mulf %25, %27 : vector<8x256xf32>
    %c16 = arith.constant 16 : index
    %c0_23 = arith.constant 0 : index
    %29 = vector.load %arg11[%c16, %c0_23] : memref<72x256xf32, #tpu.memory_space<vmem>>, vector<8x256xf32>
    tpu.vector_store %arg11[%c16, %c0_23], %28 {strides = array<i32>} : memref<72x256xf32, #tpu.memory_space<vmem>>, vector<8x256xf32>,
    %c1_i32 = arith.constant 1 : i32
    %30 = tpu.dynamic_rotate %14 by %c1_i32 dim 1 : vector<8x256xf32>, i32 -> vector<8x256xf32>
    %c3_24 = arith.constant 3 : index
    %c0_25 = arith.constant 0 : index
    %31 = vector.load %arg2[%c3_24, %c0_25] : memref<16x256xf32, #tpu.memory_space<vmem>>, vector<1x256xf32>
    %32 = vector.broadcast %31 : vector<1x256xf32> to vector<8x256xf32>
    %33 = arith.mulf %30, %32 : vector<8x256xf32>
    %c24_26 = arith.constant 24 : index
    %c0_27 = arith.constant 0 : index
    %34 = vector.load %arg11[%c24_26, %c0_27] : memref<72x256xf32, #tpu.memory_space<vmem>>, vector<8x256xf32>
    tpu.vector_store %arg11[%c24_26, %c0_27], %33 {strides = array<i32>} : memref<72x256xf32, #tpu.memory_space<vmem>>, vector<8x256xf32>,
    %c32 = arith.constant 32 : index
    %c0_28 = arith.constant 0 : index
    %35 = vector.load %arg11[%c32, %c0_28] : memref<72x256xf32, #tpu.memory_space<vmem>>, vector<8x256xf32>
    tpu.vector_store %arg11[%c32, %c0_28], %14 {strides = array<i32>} : memref<72x256xf32, #tpu.memory_space<vmem>>, vector<8x256xf32>,
    %c255_i32 = arith.constant 255 : i32
    %36 = tpu.dynamic_rotate %14 by %c255_i32 dim 1 : vector<8x256xf32>, i32 -> vector<8x256xf32>
    %c5 = arith.constant 5 : index
    %c0_29 = arith.constant 0 : index
    %37 = vector.load %arg2[%c5, %c0_29] : memref<16x256xf32, #tpu.memory_space<vmem>>, vector<1x256xf32>
    %38 = vector.broadcast %37 : vector<1x256xf32> to vector<8x256xf32>
    %39 = arith.mulf %36, %38 : vector<8x256xf32>
    %c40 = arith.constant 40 : index
    %c0_30 = arith.constant 0 : index
    %40 = vector.load %arg11[%c40, %c0_30] : memref<72x256xf32, #tpu.memory_space<vmem>>, vector<8x256xf32>
    tpu.vector_store %arg11[%c40, %c0_30], %39 {strides = array<i32>} : memref<72x256xf32, #tpu.memory_space<vmem>>, vector<8x256xf32>,
    %c241_i32 = arith.constant 241 : i32
    %41 = tpu.dynamic_rotate %14 by %c241_i32 dim 1 : vector<8x256xf32>, i32 -> vector<8x256xf32>
    %c6 = arith.constant 6 : index
    %c0_31 = arith.constant 0 : index
    %42 = vector.load %arg2[%c6, %c0_31] : memref<16x256xf32, #tpu.memory_space<vmem>>, vector<1x256xf32>
    %43 = vector.broadcast %42 : vector<1x256xf32> to vector<8x256xf32>
    %44 = arith.mulf %41, %43 : vector<8x256xf32>
    %c48 = arith.constant 48 : index
    %c0_32 = arith.constant 0 : index
    %45 = vector.load %arg11[%c48, %c0_32] : memref<72x256xf32, #tpu.memory_space<vmem>>, vector<8x256xf32>
    tpu.vector_store %arg11[%c48, %c0_32], %44 {strides = array<i32>} : memref<72x256xf32, #tpu.memory_space<vmem>>, vector<8x256xf32>,
    %c240_i32 = arith.constant 240 : i32
    %46 = tpu.dynamic_rotate %14 by %c240_i32 dim 1 : vector<8x256xf32>, i32 -> vector<8x256xf32>
    %c7 = arith.constant 7 : index
    %c0_33 = arith.constant 0 : index
    %47 = vector.load %arg2[%c7, %c0_33] : memref<16x256xf32, #tpu.memory_space<vmem>>, vector<1x256xf32>
    %48 = vector.broadcast %47 : vector<1x256xf32> to vector<8x256xf32>
    %49 = arith.mulf %46, %48 : vector<8x256xf32>
    %c56 = arith.constant 56 : index
    %c0_34 = arith.constant 0 : index
    %50 = vector.load %arg11[%c56, %c0_34] : memref<72x256xf32, #tpu.memory_space<vmem>>, vector<8x256xf32>
    tpu.vector_store %arg11[%c56, %c0_34], %49 {strides = array<i32>} : memref<72x256xf32, #tpu.memory_space<vmem>>, vector<8x256xf32>,
    %c239_i32 = arith.constant 239 : i32
    %51 = tpu.dynamic_rotate %14 by %c239_i32 dim 1 : vector<8x256xf32>, i32 -> vector<8x256xf32>
    %c8_35 = arith.constant 8 : index
    %c0_36 = arith.constant 0 : index
    %52 = vector.load %arg2[%c8_35, %c0_36] : memref<16x256xf32, #tpu.memory_space<vmem>>, vector<1x256xf32>
    %53 = vector.broadcast %52 : vector<1x256xf32> to vector<8x256xf32>
    %54 = arith.mulf %51, %53 : vector<8x256xf32>
    %c64 = arith.constant 64 : index
    %c0_37 = arith.constant 0 : index
    %55 = vector.load %arg11[%c64, %c0_37] : memref<72x256xf32, #tpu.memory_space<vmem>>, vector<8x256xf32>
    tpu.vector_store %arg11[%c64, %c0_37], %54 {strides = array<i32>} : memref<72x256xf32, #tpu.memory_space<vmem>>, vector<8x256xf32>,
    %c0_38 = arith.constant 0 : index
    %c0_39 = arith.constant 0 : index
    %c0_40 = arith.constant 0 : index
    %56 = vector.load %arg5[%c0_38, %c0_39, %c0_40] : memref<3x8x72xf32, #tpu.memory_space<vmem>>, vector<1x8x72xf32>
    %57 = vector.shape_cast %56 : vector<1x8x72xf32> to vector<8x72xf32>
    %c0_41 = arith.constant 0 : index
    %c0_42 = arith.constant 0 : index
    %58 = vector.load %arg11[%c0_41, %c0_42] : memref<72x256xf32, #tpu.memory_space<vmem>>, vector<72x256xf32>
    %cst_43 = arith.constant dense<0.000000e+00> : vector<8x256xf32>
    %59 = tpu.matmul %57, %58, %cst_43 {dimension_numbers = #tpu.dot_dimension_numbers<[1], [0], [0], [1], [0, 0, 1, 1], [], []>} : vector<8x72xf32>, vector<72x256xf32>, vector<8x256xf32> -> vector<8x256xf32>
    %c0_44 = arith.constant 0 : index
    %c0_45 = arith.constant 0 : index
    %c0_46 = arith.constant 0 : index
    %60 = vector.load %arg6[%c0_44, %c0_45, %c0_46] : memref<3x8x1xf32, #tpu.memory_space<vmem>>, vector<1x8x1xf32>
    %61 = vector.shape_cast %60 : vector<1x8x1xf32> to vector<8x1xf32>
    %62 = vector.broadcast %61 : vector<8x1xf32> to vector<8x256xf32>
    %63 = arith.addf %59, %62 : vector<8x256xf32>
    %cst_47 = arith.constant 0.000000e+00 : f32
    %64 = vector.broadcast %cst_47 : f32 to vector<8x256xf32>
    %65 = arith.maximumf %63, %64 : vector<8x256xf32>
    %c0_48 = arith.constant 0 : index
    %c0_49 = arith.constant 0 : index
    %66 = vector.load %arg12[%c0_48, %c0_49] : memref<64x256xf32, #tpu.memory_space<vmem>>, vector<64x256xf32>
    %c0_50 = arith.constant 0 : index
    %c0_51 = arith.constant 0 : index
    %c0_52 = arith.constant 0 : index
    %67 = vector.load %arg7[%c0_50, %c0_51, %c0_52] : memref<4x64x8xf32, #tpu.memory_space<vmem>>, vector<1x64x8xf32>
    %68 = vector.shape_cast %67 : vector<1x64x8xf32> to vector<64x8xf32>
    %cst_53 = arith.constant dense<0.000000e+00> : vector<64x256xf32>
    %69 = tpu.matmul %68, %65, %cst_53 {dimension_numbers = #tpu.dot_dimension_numbers<[1], [0], [0], [1], [0, 0, 1, 1], [], []>} : vector<64x8xf32>, vector<8x256xf32>, vector<64x256xf32> -> vector<64x256xf32>
    %70 = arith.addf %66, %69 : vector<64x256xf32>
    %c0_54 = arith.constant 0 : index
    %c0_55 = arith.constant 0 : index
    %71 = vector.load %arg12[%c0_54, %c0_55] : memref<64x256xf32, #tpu.memory_space<vmem>>, vector<64x256xf32>
    tpu.vector_store %arg12[%c0_54, %c0_55], %70 {strides = array<i32>} : memref<64x256xf32, #tpu.memory_space<vmem>>, vector<64x256xf32>,
    %c8_56 = arith.constant 8 : index
    %c0_57 = arith.constant 0 : index
    %72 = vector.load %arg10[%c8_56, %c0_57] : memref<32x256xf32, #tpu.memory_space<vmem>>, vector<8x256xf32>
    %73 = arith.addf %65, %72 : vector<8x256xf32>
    %c17_i32_58 = arith.constant 17 : i32
    %74 = tpu.dynamic_rotate %73 by %c17_i32_58 dim 1 : vector<8x256xf32>, i32 -> vector<8x256xf32>
    %c0_59 = arith.constant 0 : index
    %c0_60 = arith.constant 0 : index
    %75 = vector.load %arg2[%c0_59, %c0_60] : memref<16x256xf32, #tpu.memory_space<vmem>>, vector<1x256xf32>
    %76 = vector.broadcast %75 : vector<1x256xf32> to vector<8x256xf32>
    %77 = arith.mulf %74, %76 : vector<8x256xf32>
    %c0_61 = arith.constant 0 : index
    %c0_62 = arith.constant 0 : index
    %78 = vector.load %arg11[%c0_61, %c0_62] : memref<72x256xf32, #tpu.memory_space<vmem>>, vector<8x256xf32>
    tpu.vector_store %arg11[%c0_61, %c0_62], %77 {strides = array<i32>} : memref<72x256xf32, #tpu.memory_space<vmem>>, vector<8x256xf32>,
    %c16_i32_63 = arith.constant 16 : i32
    %79 = tpu.dynamic_rotate %73 by %c16_i32_63 dim 1 : vector<8x256xf32>, i32 -> vector<8x256xf32>
    %c1_64 = arith.constant 1 : index
    %c0_65 = arith.constant 0 : index
    %80 = vector.load %arg2[%c1_64, %c0_65] : memref<16x256xf32, #tpu.memory_space<vmem>>, vector<1x256xf32>
    %81 = vector.broadcast %80 : vector<1x256xf32> to vector<8x256xf32>
    %82 = arith.mulf %79, %81 : vector<8x256xf32>
    %c8_66 = arith.constant 8 : index
    %c0_67 = arith.constant 0 : index
    %83 = vector.load %arg11[%c8_66, %c0_67] : memref<72x256xf32, #tpu.memory_space<vmem>>, vector<8x256xf32>
    tpu.vector_store %arg11[%c8_66, %c0_67], %82 {strides = array<i32>} : memref<72x256xf32, #tpu.memory_space<vmem>>, vector<8x256xf32>,
    %c15_i32_68 = arith.constant 15 : i32
    %84 = tpu.dynamic_rotate %73 by %c15_i32_68 dim 1 : vector<8x256xf32>, i32 -> vector<8x256xf32>
    %c2_69 = arith.constant 2 : index
    %c0_70 = arith.constant 0 : index
    %85 = vector.load %arg2[%c2_69, %c0_70] : memref<16x256xf32, #tpu.memory_space<vmem>>, vector<1x256xf32>
    %86 = vector.broadcast %85 : vector<1x256xf32> to vector<8x256xf32>
    %87 = arith.mulf %84, %86 : vector<8x256xf32>
    %c16_71 = arith.constant 16 : index
    %c0_72 = arith.constant 0 : index
    %88 = vector.load %arg11[%c16_71, %c0_72] : memref<72x256xf32, #tpu.memory_space<vmem>>, vector<8x256xf32>
    tpu.vector_store %arg11[%c16_71, %c0_72], %87 {strides = array<i32>} : memref<72x256xf32, #tpu.memory_space<vmem>>, vector<8x256xf32>,
    %c1_i32_73 = arith.constant 1 : i32
    %89 = tpu.dynamic_rotate %73 by %c1_i32_73 dim 1 : vector<8x256xf32>, i32 -> vector<8x256xf32>
    %c3_74 = arith.constant 3 : index
    %c0_75 = arith.constant 0 : index
    %90 = vector.load %arg2[%c3_74, %c0_75] : memref<16x256xf32, #tpu.memory_space<vmem>>, vector<1x256xf32>
    %91 = vector.broadcast %90 : vector<1x256xf32> to vector<8x256xf32>
    %92 = arith.mulf %89, %91 : vector<8x256xf32>
    %c24_76 = arith.constant 24 : index
    %c0_77 = arith.constant 0 : index
    %93 = vector.load %arg11[%c24_76, %c0_77] : memref<72x256xf32, #tpu.memory_space<vmem>>, vector<8x256xf32>
    tpu.vector_store %arg11[%c24_76, %c0_77], %92 {strides = array<i32>} : memref<72x256xf32, #tpu.memory_space<vmem>>, vector<8x256xf32>,
    %c32_78 = arith.constant 32 : index
    %c0_79 = arith.constant 0 : index
    %94 = vector.load %arg11[%c32_78, %c0_79] : memref<72x256xf32, #tpu.memory_space<vmem>>, vector<8x256xf32>
    tpu.vector_store %arg11[%c32_78, %c0_79], %73 {strides = array<i32>} : memref<72x256xf32, #tpu.memory_space<vmem>>, vector<8x256xf32>,
    %c255_i32_80 = arith.constant 255 : i32
    %95 = tpu.dynamic_rotate %73 by %c255_i32_80 dim 1 : vector<8x256xf32>, i32 -> vector<8x256xf32>
    %c5_81 = arith.constant 5 : index
    %c0_82 = arith.constant 0 : index
    %96 = vector.load %arg2[%c5_81, %c0_82] : memref<16x256xf32, #tpu.memory_space<vmem>>, vector<1x256xf32>
    %97 = vector.broadcast %96 : vector<1x256xf32> to vector<8x256xf32>
    %98 = arith.mulf %95, %97 : vector<8x256xf32>
    %c40_83 = arith.constant 40 : index
    %c0_84 = arith.constant 0 : index
    %99 = vector.load %arg11[%c40_83, %c0_84] : memref<72x256xf32, #tpu.memory_space<vmem>>, vector<8x256xf32>
    tpu.vector_store %arg11[%c40_83, %c0_84], %98 {strides = array<i32>} : memref<72x256xf32, #tpu.memory_space<vmem>>, vector<8x256xf32>,
    %c241_i32_85 = arith.constant 241 : i32
    %100 = tpu.dynamic_rotate %73 by %c241_i32_85 dim 1 : vector<8x256xf32>, i32 -> vector<8x256xf32>
    %c6_86 = arith.constant 6 : index
    %c0_87 = arith.constant 0 : index
    %101 = vector.load %arg2[%c6_86, %c0_87] : memref<16x256xf32, #tpu.memory_space<vmem>>, vector<1x256xf32>
    %102 = vector.broadcast %101 : vector<1x256xf32> to vector<8x256xf32>
    %103 = arith.mulf %100, %102 : vector<8x256xf32>
    %c48_88 = arith.constant 48 : index
    %c0_89 = arith.constant 0 : index
    %104 = vector.load %arg11[%c48_88, %c0_89] : memref<72x256xf32, #tpu.memory_space<vmem>>, vector<8x256xf32>
    tpu.vector_store %arg11[%c48_88, %c0_89], %103 {strides = array<i32>} : memref<72x256xf32, #tpu.memory_space<vmem>>, vector<8x256xf32>,
    %c240_i32_90 = arith.constant 240 : i32
    %105 = tpu.dynamic_rotate %73 by %c240_i32_90 dim 1 : vector<8x256xf32>, i32 -> vector<8x256xf32>
    %c7_91 = arith.constant 7 : index
    %c0_92 = arith.constant 0 : index
    %106 = vector.load %arg2[%c7_91, %c0_92] : memref<16x256xf32, #tpu.memory_space<vmem>>, vector<1x256xf32>
    %107 = vector.broadcast %106 : vector<1x256xf32> to vector<8x256xf32>
    %108 = arith.mulf %105, %107 : vector<8x256xf32>
    %c56_93 = arith.constant 56 : index
    %c0_94 = arith.constant 0 : index
    %109 = vector.load %arg11[%c56_93, %c0_94] : memref<72x256xf32, #tpu.memory_space<vmem>>, vector<8x256xf32>
    tpu.vector_store %arg11[%c56_93, %c0_94], %108 {strides = array<i32>} : memref<72x256xf32, #tpu.memory_space<vmem>>, vector<8x256xf32>,
    %c239_i32_95 = arith.constant 239 : i32
    %110 = tpu.dynamic_rotate %73 by %c239_i32_95 dim 1 : vector<8x256xf32>, i32 -> vector<8x256xf32>
    %c8_96 = arith.constant 8 : index
    %c0_97 = arith.constant 0 : index
    %111 = vector.load %arg2[%c8_96, %c0_97] : memref<16x256xf32, #tpu.memory_space<vmem>>, vector<1x256xf32>
    %112 = vector.broadcast %111 : vector<1x256xf32> to vector<8x256xf32>
    %113 = arith.mulf %110, %112 : vector<8x256xf32>
    %c64_98 = arith.constant 64 : index
    %c0_99 = arith.constant 0 : index
    %114 = vector.load %arg11[%c64_98, %c0_99] : memref<72x256xf32, #tpu.memory_space<vmem>>, vector<8x256xf32>
    tpu.vector_store %arg11[%c64_98, %c0_99], %113 {strides = array<i32>} : memref<72x256xf32, #tpu.memory_space<vmem>>, vector<8x256xf32>,
    %c1_100 = arith.constant 1 : index
    %c0_101 = arith.constant 0 : index
    %c0_102 = arith.constant 0 : index
    %115 = vector.load %arg5[%c1_100, %c0_101, %c0_102] : memref<3x8x72xf32, #tpu.memory_space<vmem>>, vector<1x8x72xf32>
    %116 = vector.shape_cast %115 : vector<1x8x72xf32> to vector<8x72xf32>
    %c0_103 = arith.constant 0 : index
    %c0_104 = arith.constant 0 : index
    %117 = vector.load %arg11[%c0_103, %c0_104] : memref<72x256xf32, #tpu.memory_space<vmem>>, vector<72x256xf32>
    %cst_105 = arith.constant dense<0.000000e+00> : vector<8x256xf32>
    %118 = tpu.matmul %116, %117, %cst_105 {dimension_numbers = #tpu.dot_dimension_numbers<[1], [0], [0], [1], [0, 0, 1, 1], [], []>} : vector<8x72xf32>, vector<72x256xf32>, vector<8x256xf32> -> vector<8x256xf32>
    %c1_106 = arith.constant 1 : index
    %c0_107 = arith.constant 0 : index
    %c0_108 = arith.constant 0 : index
    %119 = vector.load %arg6[%c1_106, %c0_107, %c0_108] : memref<3x8x1xf32, #tpu.memory_space<vmem>>, vector<1x8x1xf32>
    %120 = vector.shape_cast %119 : vector<1x8x1xf32> to vector<8x1xf32>
    %121 = vector.broadcast %120 : vector<8x1xf32> to vector<8x256xf32>
    %122 = arith.addf %118, %121 : vector<8x256xf32>
    %cst_109 = arith.constant 0.000000e+00 : f32
    %123 = vector.broadcast %cst_109 : f32 to vector<8x256xf32>
    %124 = arith.maximumf %122, %123 : vector<8x256xf32>
    %c0_110 = arith.constant 0 : index
    %c0_111 = arith.constant 0 : index
    %125 = vector.load %arg12[%c0_110, %c0_111] : memref<64x256xf32, #tpu.memory_space<vmem>>, vector<64x256xf32>
    %c1_112 = arith.constant 1 : index
    %c0_113 = arith.constant 0 : index
    %c0_114 = arith.constant 0 : index
    %126 = vector.load %arg7[%c1_112, %c0_113, %c0_114] : memref<4x64x8xf32, #tpu.memory_space<vmem>>, vector<1x64x8xf32>
    %127 = vector.shape_cast %126 : vector<1x64x8xf32> to vector<64x8xf32>
    %cst_115 = arith.constant dense<0.000000e+00> : vector<64x256xf32>
    %128 = tpu.matmul %127, %124, %cst_115 {dimension_numbers = #tpu.dot_dimension_numbers<[1], [0], [0], [1], [0, 0, 1, 1], [], []>} : vector<64x8xf32>, vector<8x256xf32>, vector<64x256xf32> -> vector<64x256xf32>
    %129 = arith.addf %125, %128 : vector<64x256xf32>
    %c0_116 = arith.constant 0 : index
    %c0_117 = arith.constant 0 : index
    %130 = vector.load %arg12[%c0_116, %c0_117] : memref<64x256xf32, #tpu.memory_space<vmem>>, vector<64x256xf32>
    tpu.vector_store %arg12[%c0_116, %c0_117], %129 {strides = array<i32>} : memref<64x256xf32, #tpu.memory_space<vmem>>, vector<64x256xf32>,
    %c16_118 = arith.constant 16 : index
    %c0_119 = arith.constant 0 : index
    %131 = vector.load %arg10[%c16_118, %c0_119] : memref<32x256xf32, #tpu.memory_space<vmem>>, vector<8x256xf32>
    %132 = arith.addf %124, %131 : vector<8x256xf32>
    %c17_i32_120 = arith.constant 17 : i32
    %133 = tpu.dynamic_rotate %132 by %c17_i32_120 dim 1 : vector<8x256xf32>, i32 -> vector<8x256xf32>
    %c0_121 = arith.constant 0 : index
    %c0_122 = arith.constant 0 : index
    %134 = vector.load %arg2[%c0_121, %c0_122] : memref<16x256xf32, #tpu.memory_space<vmem>>, vector<1x256xf32>
    %135 = vector.broadcast %134 : vector<1x256xf32> to vector<8x256xf32>
    %136 = arith.mulf %133, %135 : vector<8x256xf32>
    %c0_123 = arith.constant 0 : index
    %c0_124 = arith.constant 0 : index
    %137 = vector.load %arg11[%c0_123, %c0_124] : memref<72x256xf32, #tpu.memory_space<vmem>>, vector<8x256xf32>
    tpu.vector_store %arg11[%c0_123, %c0_124], %136 {strides = array<i32>} : memref<72x256xf32, #tpu.memory_space<vmem>>, vector<8x256xf32>,
    %c16_i32_125 = arith.constant 16 : i32
    %138 = tpu.dynamic_rotate %132 by %c16_i32_125 dim 1 : vector<8x256xf32>, i32 -> vector<8x256xf32>
    %c1_126 = arith.constant 1 : index
    %c0_127 = arith.constant 0 : index
    %139 = vector.load %arg2[%c1_126, %c0_127] : memref<16x256xf32, #tpu.memory_space<vmem>>, vector<1x256xf32>
    %140 = vector.broadcast %139 : vector<1x256xf32> to vector<8x256xf32>
    %141 = arith.mulf %138, %140 : vector<8x256xf32>
    %c8_128 = arith.constant 8 : index
    %c0_129 = arith.constant 0 : index
    %142 = vector.load %arg11[%c8_128, %c0_129] : memref<72x256xf32, #tpu.memory_space<vmem>>, vector<8x256xf32>
    tpu.vector_store %arg11[%c8_128, %c0_129], %141 {strides = array<i32>} : memref<72x256xf32, #tpu.memory_space<vmem>>, vector<8x256xf32>,
    %c15_i32_130 = arith.constant 15 : i32
    %143 = tpu.dynamic_rotate %132 by %c15_i32_130 dim 1 : vector<8x256xf32>, i32 -> vector<8x256xf32>
    %c2_131 = arith.constant 2 : index
    %c0_132 = arith.constant 0 : index
    %144 = vector.load %arg2[%c2_131, %c0_132] : memref<16x256xf32, #tpu.memory_space<vmem>>, vector<1x256xf32>
    %145 = vector.broadcast %144 : vector<1x256xf32> to vector<8x256xf32>
    %146 = arith.mulf %143, %145 : vector<8x256xf32>
    %c16_133 = arith.constant 16 : index
    %c0_134 = arith.constant 0 : index
    %147 = vector.load %arg11[%c16_133, %c0_134] : memref<72x256xf32, #tpu.memory_space<vmem>>, vector<8x256xf32>
    tpu.vector_store %arg11[%c16_133, %c0_134], %146 {strides = array<i32>} : memref<72x256xf32, #tpu.memory_space<vmem>>, vector<8x256xf32>,
    %c1_i32_135 = arith.constant 1 : i32
    %148 = tpu.dynamic_rotate %132 by %c1_i32_135 dim 1 : vector<8x256xf32>, i32 -> vector<8x256xf32>
    %c3_136 = arith.constant 3 : index
    %c0_137 = arith.constant 0 : index
    %149 = vector.load %arg2[%c3_136, %c0_137] : memref<16x256xf32, #tpu.memory_space<vmem>>, vector<1x256xf32>
    %150 = vector.broadcast %149 : vector<1x256xf32> to vector<8x256xf32>
    %151 = arith.mulf %148, %150 : vector<8x256xf32>
    %c24_138 = arith.constant 24 : index
    %c0_139 = arith.constant 0 : index
    %152 = vector.load %arg11[%c24_138, %c0_139] : memref<72x256xf32, #tpu.memory_space<vmem>>, vector<8x256xf32>
    tpu.vector_store %arg11[%c24_138, %c0_139], %151 {strides = array<i32>} : memref<72x256xf32, #tpu.memory_space<vmem>>, vector<8x256xf32>,
    %c32_140 = arith.constant 32 : index
    %c0_141 = arith.constant 0 : index
    %153 = vector.load %arg11[%c32_140, %c0_141] : memref<72x256xf32, #tpu.memory_space<vmem>>, vector<8x256xf32>
    tpu.vector_store %arg11[%c32_140, %c0_141], %132 {strides = array<i32>} : memref<72x256xf32, #tpu.memory_space<vmem>>, vector<8x256xf32>,
    %c255_i32_142 = arith.constant 255 : i32
    %154 = tpu.dynamic_rotate %132 by %c255_i32_142 dim 1 : vector<8x256xf32>, i32 -> vector<8x256xf32>
    %c5_143 = arith.constant 5 : index
    %c0_144 = arith.constant 0 : index
    %155 = vector.load %arg2[%c5_143, %c0_144] : memref<16x256xf32, #tpu.memory_space<vmem>>, vector<1x256xf32>
    %156 = vector.broadcast %155 : vector<1x256xf32> to vector<8x256xf32>
    %157 = arith.mulf %154, %156 : vector<8x256xf32>
    %c40_145 = arith.constant 40 : index
    %c0_146 = arith.constant 0 : index
    %158 = vector.load %arg11[%c40_145, %c0_146] : memref<72x256xf32, #tpu.memory_space<vmem>>, vector<8x256xf32>
    tpu.vector_store %arg11[%c40_145, %c0_146], %157 {strides = array<i32>} : memref<72x256xf32, #tpu.memory_space<vmem>>, vector<8x256xf32>,
    %c241_i32_147 = arith.constant 241 : i32
    %159 = tpu.dynamic_rotate %132 by %c241_i32_147 dim 1 : vector<8x256xf32>, i32 -> vector<8x256xf32>
    %c6_148 = arith.constant 6 : index
    %c0_149 = arith.constant 0 : index
    %160 = vector.load %arg2[%c6_148, %c0_149] : memref<16x256xf32, #tpu.memory_space<vmem>>, vector<1x256xf32>
    %161 = vector.broadcast %160 : vector<1x256xf32> to vector<8x256xf32>
    %162 = arith.mulf %159, %161 : vector<8x256xf32>
    %c48_150 = arith.constant 48 : index
    %c0_151 = arith.constant 0 : index
    %163 = vector.load %arg11[%c48_150, %c0_151] : memref<72x256xf32, #tpu.memory_space<vmem>>, vector<8x256xf32>
    tpu.vector_store %arg11[%c48_150, %c0_151], %162 {strides = array<i32>} : memref<72x256xf32, #tpu.memory_space<vmem>>, vector<8x256xf32>,
    %c240_i32_152 = arith.constant 240 : i32
    %164 = tpu.dynamic_rotate %132 by %c240_i32_152 dim 1 : vector<8x256xf32>, i32 -> vector<8x256xf32>
    %c7_153 = arith.constant 7 : index
    %c0_154 = arith.constant 0 : index
    %165 = vector.load %arg2[%c7_153, %c0_154] : memref<16x256xf32, #tpu.memory_space<vmem>>, vector<1x256xf32>
    %166 = vector.broadcast %165 : vector<1x256xf32> to vector<8x256xf32>
    %167 = arith.mulf %164, %166 : vector<8x256xf32>
    %c56_155 = arith.constant 56 : index
    %c0_156 = arith.constant 0 : index
    %168 = vector.load %arg11[%c56_155, %c0_156] : memref<72x256xf32, #tpu.memory_space<vmem>>, vector<8x256xf32>
    tpu.vector_store %arg11[%c56_155, %c0_156], %167 {strides = array<i32>} : memref<72x256xf32, #tpu.memory_space<vmem>>, vector<8x256xf32>,
    %c239_i32_157 = arith.constant 239 : i32
    %169 = tpu.dynamic_rotate %132 by %c239_i32_157 dim 1 : vector<8x256xf32>, i32 -> vector<8x256xf32>
    %c8_158 = arith.constant 8 : index
    %c0_159 = arith.constant 0 : index
    %170 = vector.load %arg2[%c8_158, %c0_159] : memref<16x256xf32, #tpu.memory_space<vmem>>, vector<1x256xf32>
    %171 = vector.broadcast %170 : vector<1x256xf32> to vector<8x256xf32>
    %172 = arith.mulf %169, %171 : vector<8x256xf32>
    %c64_160 = arith.constant 64 : index
    %c0_161 = arith.constant 0 : index
    %173 = vector.load %arg11[%c64_160, %c0_161] : memref<72x256xf32, #tpu.memory_space<vmem>>, vector<8x256xf32>
    tpu.vector_store %arg11[%c64_160, %c0_161], %172 {strides = array<i32>} : memref<72x256xf32, #tpu.memory_space<vmem>>, vector<8x256xf32>,
    %c2_162 = arith.constant 2 : index
    %c0_163 = arith.constant 0 : index
    %c0_164 = arith.constant 0 : index
    %174 = vector.load %arg5[%c2_162, %c0_163, %c0_164] : memref<3x8x72xf32, #tpu.memory_space<vmem>>, vector<1x8x72xf32>
    %175 = vector.shape_cast %174 : vector<1x8x72xf32> to vector<8x72xf32>
    %c0_165 = arith.constant 0 : index
    %c0_166 = arith.constant 0 : index
    %176 = vector.load %arg11[%c0_165, %c0_166] : memref<72x256xf32, #tpu.memory_space<vmem>>, vector<72x256xf32>
    %cst_167 = arith.constant dense<0.000000e+00> : vector<8x256xf32>
    %177 = tpu.matmul %175, %176, %cst_167 {dimension_numbers = #tpu.dot_dimension_numbers<[1], [0], [0], [1], [0, 0, 1, 1], [], []>} : vector<8x72xf32>, vector<72x256xf32>, vector<8x256xf32> -> vector<8x256xf32>
    %c2_168 = arith.constant 2 : index
    %c0_169 = arith.constant 0 : index
    %c0_170 = arith.constant 0 : index
    %178 = vector.load %arg6[%c2_168, %c0_169, %c0_170] : memref<3x8x1xf32, #tpu.memory_space<vmem>>, vector<1x8x1xf32>
    %179 = vector.shape_cast %178 : vector<1x8x1xf32> to vector<8x1xf32>
    %180 = vector.broadcast %179 : vector<8x1xf32> to vector<8x256xf32>
    %181 = arith.addf %177, %180 : vector<8x256xf32>
    %cst_171 = arith.constant 0.000000e+00 : f32
    %182 = vector.broadcast %cst_171 : f32 to vector<8x256xf32>
    %183 = arith.maximumf %181, %182 : vector<8x256xf32>
    %c0_172 = arith.constant 0 : index
    %c0_173 = arith.constant 0 : index
    %184 = vector.load %arg12[%c0_172, %c0_173] : memref<64x256xf32, #tpu.memory_space<vmem>>, vector<64x256xf32>
    %c2_174 = arith.constant 2 : index
    %c0_175 = arith.constant 0 : index
    %c0_176 = arith.constant 0 : index
    %185 = vector.load %arg7[%c2_174, %c0_175, %c0_176] : memref<4x64x8xf32, #tpu.memory_space<vmem>>, vector<1x64x8xf32>
    %186 = vector.shape_cast %185 : vector<1x64x8xf32> to vector<64x8xf32>
    %cst_177 = arith.constant dense<0.000000e+00> : vector<64x256xf32>
    %187 = tpu.matmul %186, %183, %cst_177 {dimension_numbers = #tpu.dot_dimension_numbers<[1], [0], [0], [1], [0, 0, 1, 1], [], []>} : vector<64x8xf32>, vector<8x256xf32>, vector<64x256xf32> -> vector<64x256xf32>
    %188 = arith.addf %184, %187 : vector<64x256xf32>
    %c0_178 = arith.constant 0 : index
    %c0_179 = arith.constant 0 : index
    %189 = vector.load %arg12[%c0_178, %c0_179] : memref<64x256xf32, #tpu.memory_space<vmem>>, vector<64x256xf32>
    tpu.vector_store %arg12[%c0_178, %c0_179], %188 {strides = array<i32>} : memref<64x256xf32, #tpu.memory_space<vmem>>, vector<64x256xf32>,
    %c0_180 = arith.constant 0 : index
    %c0_181 = arith.constant 0 : index
    %190 = vector.load %arg12[%c0_180, %c0_181] : memref<64x256xf32, #tpu.memory_space<vmem>>, vector<64x256xf32>
    %c0_182 = arith.constant 0 : index
    %c0_183 = arith.constant 0 : index
    %191 = vector.load %arg8[%c0_182, %c0_183] : memref<64x1xf32, #tpu.memory_space<vmem>>, vector<64x1xf32>
    %192 = vector.broadcast %191 : vector<64x1xf32> to vector<64x256xf32>
    %193 = arith.addf %190, %192 : vector<64x256xf32>
    %c0_184 = arith.constant 0 : index
    %c0_185 = arith.constant 0 : index
    %194 = vector.load %arg1[%c0_184, %c0_185] : memref<64x256xf32, #tpu.memory_space<vmem>>, vector<64x256xf32>
    %195 = arith.addf %193, %194 : vector<64x256xf32>
    %cst_186 = arith.constant 0.000000e+00 : f32
    %196 = vector.broadcast %cst_186 : f32 to vector<64x256xf32>
    %197 = arith.maximumf %195, %196 : vector<64x256xf32>
    %c0_187 = arith.constant 0 : index
    %c0_188 = arith.constant 0 : index
    %198 = vector.load %arg9[%c0_187, %c0_188] : memref<64x256xf32, #tpu.memory_space<vmem>>, vector<64x256xf32>
    tpu.vector_store %arg9[%c0_187, %c0_188], %197 {strides = array<i32>} : memref<64x256xf32, #tpu.memory_space<vmem>>, vector<64x256xf32>,
    return
  }
  func.func @transform_0(%arg0: i32) -> (i32, i32) {
    %c0_i32 = arith.constant 0 : i32
    %c0_i32_0 = arith.constant 0 : i32
    return %c0_i32, %arg0 : i32, i32
  }
  func.func @transform_1(%arg0: i32) -> (i32, i32) {
    %c0_i32 = arith.constant 0 : i32
    %c0_i32_0 = arith.constant 0 : i32
    %c0_i32_1 = arith.constant 0 : i32
    return %c0_i32, %c0_i32_0 : i32, i32
  }
  func.func @transform_2(%arg0: i32) -> (i32, i32) {
    %c0_i32 = arith.constant 0 : i32
    %c0_i32_0 = arith.constant 0 : i32
    %c0_i32_1 = arith.constant 0 : i32
    return %c0_i32, %c0_i32_0 : i32, i32
  }
  func.func @transform_3(%arg0: i32) -> (i32, i32) {
    %c0_i32 = arith.constant 0 : i32
    %c0_i32_0 = arith.constant 0 : i32
    %c0_i32_1 = arith.constant 0 : i32
    return %c0_i32, %c0_i32_0 : i32, i32
  }
  func.func @transform_4(%arg0: i32) -> (i32, i32, i32) {
    %c0_i32 = arith.constant 0 : i32
    %c0_i32_0 = arith.constant 0 : i32
    %c0_i32_1 = arith.constant 0 : i32
    %c0_i32_2 = arith.constant 0 : i32
    return %c0_i32, %c0_i32_0, %c0_i32_1 : i32, i32, i32
  }
  func.func @transform_5(%arg0: i32) -> (i32, i32, i32) {
    %c0_i32 = arith.constant 0 : i32
    %c0_i32_0 = arith.constant 0 : i32
    %c0_i32_1 = arith.constant 0 : i32
    %c0_i32_2 = arith.constant 0 : i32
    return %c0_i32, %c0_i32_0, %c0_i32_1 : i32, i32, i32
  }
  func.func @transform_6(%arg0: i32) -> (i32, i32, i32) {
    %c0_i32 = arith.constant 0 : i32
    %c0_i32_0 = arith.constant 0 : i32
    %c0_i32_1 = arith.constant 0 : i32
    %c0_i32_2 = arith.constant 0 : i32
    return %c0_i32, %c0_i32_0, %c0_i32_1 : i32, i32, i32
  }
  func.func @transform_7(%arg0: i32) -> (i32, i32) {
    %c0_i32 = arith.constant 0 : i32
    %c0_i32_0 = arith.constant 0 : i32
    %c0_i32_1 = arith.constant 0 : i32
    return %c0_i32, %c0_i32_0 : i32, i32
  }
  func.func @transform_8(%arg0: i32) -> (i32, i32) {
    %c0_i32 = arith.constant 0 : i32
    %c0_i32_0 = arith.constant 0 : i32
    return %c0_i32, %arg0 : i32, i32
  }
}

</mosaic_0001>

<llo_original>
// kernel: bottle2neck_forward.1
$region0: #{bottle2neck_forward.1}
  #allocation0 [shape = 'u32[]', space=smem, size = 0x4, offset = 0x4, fixed_abs, tag = 'smem constant byte address 0x4 - core index']
  #allocation1 [shape = 'u32[72,128]{1,0:T(1,128)}', space=vmem, size = 0x9000, scoped, tag = 'internal scratch']
  #allocation2 [shape = 'f32[32,256]{1,0:T(8,128)}', space=vmem, size = 0x8000, scoped, tag = 'scratch operand']
  #allocation3 [shape = 'f32[72,256]{1,0:T(8,128)}', space=vmem, size = 0x12000, scoped, tag = 'scratch operand']
  #allocation4 [shape = 'f32[64,256]{1,0:T(8,128)}', space=vmem, size = 0x10000, scoped, tag = 'scratch operand']
  %s0 = inlined_call_operand.vmem [shape: f32[64,512], index: 0, kind: input, shape index: {}]
  %s1 = inlined_call_operand.vmem [shape: f32[16,256], index: 1, kind: input, shape index: {}]
  %s2 = inlined_call_operand.vmem [shape: f32[32,64], index: 2, kind: input, shape index: {}]
  %s3 = inlined_call_operand.vmem [shape: f32[32,1], index: 3, kind: input, shape index: {}]
  %s4 = inlined_call_operand.vmem [shape: f32[3,8,72], index: 4, kind: input, shape index: {}]
  %s5 = inlined_call_operand.vmem [shape: f32[3,8,1], index: 5, kind: input, shape index: {}]
  %s6 = inlined_call_operand.vmem [shape: f32[4,64,8], index: 6, kind: input, shape index: {}]
  %s7 = inlined_call_operand.vmem [shape: f32[64,1], index: 7, kind: input, shape index: {}]
  %s8 = inlined_call_operand.vmem [shape: f32[64,512], index: 8, kind: output, shape index: {}]
  %s9 = sld [smem:[#allocation0]]
  $region107: #{bottle2neck_forward.1} parent=0
    _
  %s11 = ssub.s32 1, %s9
  %s12 = scalar_select 0, %s11, %s9
  $region1: #{bottle2neck_forward.1} parent=0
    #allocation5 [shape = 'u8[131072]{0}', space=vmem, size = 0x20000, scoped, tag = 'input window, operand 0']
    #allocation6 [shape = 'u8[131072]{0}', space=vmem, size = 0x20000, scoped, tag = 'output window, operand 0']
    loop: start=0, step=1, limit=4
    $region2: #{bottle2neck_forward.1} parent=1 // loop_pre_header
      _
    $region3: #{bottle2neck_forward.1} parent=1 // loop_header
      %s14 = sphi 0, %s18
      %p15 = scmp.ge.s32.totalorder %s14, 4
      %s24 = sphi 0, %s26
      %s27 = sphi 0, %s24
      %s28 = sphi 0, %s27
      %s44 = sphi 0, %s28
      %s48 = sphi 0, %s48
      %s50 = sphi 0, %s48
      %s51 = sphi 0, %s50
      %s65 = sphi 0, %s51
      %s69 = sphi 0, %s69
      %s71 = sphi 0, %s69
      %s72 = sphi 0, %s71
      %s86 = sphi 0, %s72
      %s90 = sphi 0, %s90
      %s92 = sphi 0, %s90
      %s93 = sphi 0, %s92
      %s107 = sphi 0, %s93
      %s111 = sphi 0, %s111
      %s113 = sphi 0, %s111
      %s114 = sphi 0, %s113
      %s128 = sphi 0, %s114
      %s132 = sphi 0, %s132
      %s134 = sphi 0, %s132
      %s135 = sphi 0, %s134
      %s149 = sphi 0, %s135
      %s153 = sphi 0, %s153
      %s155 = sphi 0, %s153
      %s156 = sphi 0, %s155
      %s170 = sphi 0, %s156
      %s174 = sphi 0, %s174
      %s176 = sphi 0, %s174
      %s177 = sphi 0, %s176
      %s191 = sphi 0, %s177
      %s197 = sphi 0, %s199
      %s200 = sphi 0, %s197
      %s201 = sphi 0, %s200
      %s217 = sphi 0, %s201
    $region4: #{bottle2neck_forward.1} parent=1 // loop_header_branch
      %17 = sbr.rel (%p15) target = $region8
    $region5: #{bottle2neck_forward.1} parent=1 // loop_body
      %s19 = ssub.s32 %s14, 1
      %s20 = ssub.s32 %s14, 2
      %s21 = sadd.s32 %s14, 1
      %s22 = ssub.s32 %s14, %s21
      %p23 = scmp.eq.s32.totalorder %s22, 0
      %s25 = sadd.s32 %s24, 1
      %s26 = scalar_select %p23, %s24, %s25
      %p29 = pneg %p23
      %p30 = scmp.eq.s32.totalorder %s14, 1
      %p31 = por %p29, %p30
      %p32 = scmp.ne.s32.totalorder %s24, %s27
      %p33 = scmp.eq.s32.totalorder %s14, 0
      %p34 = por %p32, %p33
      %p35 = scmp.ne.s32.totalorder %s24, %s27
      %p36 = scmp.eq.s32.totalorder %s19, 1
      %p37 = por %p35, %p36
      %p38 = scmp.ne.s32.totalorder %s27, %s28
      %p39 = scmp.eq.s32.totalorder %s19, 0
      %p40 = por %p38, %p39
      %p41 = scmp.ne.s32.totalorder %s27, %s28
      %p42 = scmp.eq.s32.totalorder %s20, 1
      %p43 = por %p41, %p42
      %p45 = scmp.ne.s32.totalorder %s28, %s44
      %p46 = scmp.eq.s32.totalorder %s20, 0
      %p47 = por %p45, %p46
      %s49 = sadd.s32 %s48, 1
      %p52 = scmp.eq.s32.totalorder %s14, 1
      %p53 = scmp.ne.s32.totalorder %s48, %s50
      %p54 = scmp.eq.s32.totalorder %s14, 0
      %p55 = por %p53, %p54
      %p56 = scmp.ne.s32.totalorder %s48, %s50
      %p57 = scmp.eq.s32.totalorder %s19, 1
      %p58 = por %p56, %p57
      %p59 = scmp.ne.s32.totalorder %s50, %s51
      %p60 = scmp.eq.s32.totalorder %s19, 0
      %p61 = por %p59, %p60
      %p62 = scmp.ne.s32.totalorder %s50, %s51
      %p63 = scmp.eq.s32.totalorder %s20, 1
      %p64 = por %p62, %p63
      %p66 = scmp.ne.s32.totalorder %s51, %s65
      %p67 = scmp.eq.s32.totalorder %s20, 0
      %p68 = por %p66, %p67
      %s70 = sadd.s32 %s69, 1
      %p73 = scmp.eq.s32.totalorder %s14, 1
      %p74 = scmp.ne.s32.totalorder %s69, %s71
      %p75 = scmp.eq.s32.totalorder %s14, 0
      %p76 = por %p74, %p75
      %p77 = scmp.ne.s32.totalorder %s69, %s71
      %p78 = scmp.eq.s32.totalorder %s19, 1
      %p79 = por %p77, %p78
      %p80 = scmp.ne.s32.totalorder %s71, %s72
      %p81 = scmp.eq.s32.totalorder %s19, 0
      %p82 = por %p80, %p81
      %p83 = scmp.ne.s32.totalorder %s71, %s72
      %p84 = scmp.eq.s32.totalorder %s20, 1
      %p85 = por %p83, %p84
      %p87 = scmp.ne.s32.totalorder %s72, %s86
      %p88 = scmp.eq.s32.totalorder %s20, 0
      %p89 = por %p87, %p88
      %s91 = sadd.s32 %s90, 1
      %p94 = scmp.eq.s32.totalorder %s14, 1
      %p95 = scmp.ne.s32.totalorder %s90, %s92
      %p96 = scmp.eq.s32.totalorder %s14, 0
      %p97 = por %p95, %p96
      %p98 = scmp.ne.s32.totalorder %s90, %s92
      %p99 = scmp.eq.s32.totalorder %s19, 1
      %p100 = por %p98, %p99
      %p101 = scmp.ne.s32.totalorder %s92, %s93
      %p102 = scmp.eq.s32.totalorder %s19, 0
      %p103 = por %p101, %p102
      %p104 = scmp.ne.s32.totalorder %s92, %s93
      %p105 = scmp.eq.s32.totalorder %s20, 1
      %p106 = por %p104, %p105
      %p108 = scmp.ne.s32.totalorder %s93, %s107
      %p109 = scmp.eq.s32.totalorder %s20, 0
      %p110 = por %p108, %p109
      %s112 = sadd.s32 %s111, 1
      %p115 = scmp.eq.s32.totalorder %s14, 1
      %p116 = scmp.ne.s32.totalorder %s111, %s113
      %p117 = scmp.eq.s32.totalorder %s14, 0
      %p118 = por %p116, %p117
      %p119 = scmp.ne.s32.totalorder %s111, %s113
      %p120 = scmp.eq.s32.totalorder %s19, 1
      %p121 = por %p119, %p120
      %p122 = scmp.ne.s32.totalorder %s113, %s114
      %p123 = scmp.eq.s32.totalorder %s19, 0
      %p124 = por %p122, %p123
      %p125 = scmp.ne.s32.totalorder %s113, %s114
      %p126 = scmp.eq.s32.totalorder %s20, 1
      %p127 = por %p125, %p126
      %p129 = scmp.ne.s32.totalorder %s114, %s128
      %p130 = scmp.eq.s32.totalorder %s20, 0
      %p131 = por %p129, %p130
      %s133 = sadd.s32 %s132, 1
      %p136 = scmp.eq.s32.totalorder %s14, 1
      %p137 = scmp.ne.s32.totalorder %s132, %s134
      %p138 = scmp.eq.s32.totalorder %s14, 0
      %p139 = por %p137, %p138
      %p140 = scmp.ne.s32.totalorder %s132, %s134
      %p141 = scmp.eq.s32.totalorder %s19, 1
      %p142 = por %p140, %p141
      %p143 = scmp.ne.s32.totalorder %s134, %s135
      %p144 = scmp.eq.s32.totalorder %s19, 0
      %p145 = por %p143, %p144
      %p146 = scmp.ne.s32.totalorder %s134, %s135
      %p147 = scmp.eq.s32.totalorder %s20, 1
      %p148 = por %p146, %p147
      %p150 = scmp.ne.s32.totalorder %s135, %s149
      %p151 = scmp.eq.s32.totalorder %s20, 0
      %p152 = por %p150, %p151
      %s154 = sadd.s32 %s153, 1
      %p157 = scmp.eq.s32.totalorder %s14, 1
      %p158 = scmp.ne.s32.totalorder %s153, %s155
      %p159 = scmp.eq.s32.totalorder %s14, 0
      %p160 = por %p158, %p159
      %p161 = scmp.ne.s32.totalorder %s153, %s155
      %p162 = scmp.eq.s32.totalorder %s19, 1
      %p163 = por %p161, %p162
      %p164 = scmp.ne.s32.totalorder %s155, %s156
      %p165 = scmp.eq.s32.totalorder %s19, 0
      %p166 = por %p164, %p165
      %p167 = scmp.ne.s32.totalorder %s155, %s156
      %p168 = scmp.eq.s32.totalorder %s20, 1
      %p169 = por %p167, %p168
      %p171 = scmp.ne.s32.totalorder %s156, %s170
      %p172 = scmp.eq.s32.totalorder %s20, 0
      %p173 = por %p171, %p172
      %s175 = sadd.s32 %s174, 1
      %p178 = scmp.eq.s32.totalorder %s14, 1
      %p179 = scmp.ne.s32.totalorder %s174, %s176
      %p180 = scmp.eq.s32.totalorder %s14, 0
      %p181 = por %p179, %p180
      %p182 = scmp.ne.s32.totalorder %s174, %s176
      %p183 = scmp.eq.s32.totalorder %s19, 1
      %p184 = por %p182, %p183
      %p185 = scmp.ne.s32.totalorder %s176, %s177
      %p186 = scmp.eq.s32.totalorder %s19, 0
      %p187 = por %p185, %p186
      %p188 = scmp.ne.s32.totalorder %s176, %s177
      %p189 = scmp.eq.s32.totalorder %s20, 1
      %p190 = por %p188, %p189
      %p192 = scmp.ne.s32.totalorder %s177, %s191
      %p193 = scmp.eq.s32.totalorder %s20, 0
      %p194 = por %p192, %p193
      %s195 = ssub.s32 %s14, %s21
      %p196 = scmp.eq.s32.totalorder %s195, 0
      %s198 = sadd.s32 %s197, 1
      %s199 = scalar_select %p196, %s197, %s198
      %p202 = pneg %p196
      %p203 = scmp.eq.s32.totalorder %s14, 1
      %p204 = por %p202, %p203
      %p205 = scmp.ne.s32.totalorder %s197, %s200
      %p206 = scmp.eq.s32.totalorder %s14, 0
      %p207 = por %p205, %p206
      %p208 = scmp.ne.s32.totalorder %s197, %s200
      %p209 = scmp.eq.s32.totalorder %s19, 1
      %p210 = por %p208, %p209
      %p211 = scmp.ne.s32.totalorder %s200, %s201
      %p212 = scmp.eq.s32.totalorder %s19, 0
      %p213 = por %p211, %p212
      %p214 = scmp.ne.s32.totalorder %s200, %s201
      %p215 = scmp.eq.s32.totalorder %s20, 1
      %p216 = por %p214, %p215
      %p218 = scmp.ne.s32.totalorder %s201, %s217
      %p219 = scmp.eq.s32.totalorder %s20, 0
      %p220 = por %p218, %p219
      %p221 = scmp.le.s32.totalorder 1, %s14
      %p222 = scmp.lt.s32.totalorder %s14, 3
      %p223 = pnand %p221, %p222
      %p224 = pneg %p223
      // Predicated region
      $region9: #{bottle2neck_forward.1} parent=5 // pred_check
        _
      $region10: #{bottle2neck_forward.1} parent=5 // pred_check_branch
        %226 = sbr.rel (%p223) target = $region12
      $region11: #{bottle2neck_forward.1} parent=5 // pred_region
        %s227 = ssub.s32 %s14, 1
        // Predicated region
        $region13: #{bottle2neck_forward.1} parent=11 // pred_check
          %p228 = pneg %p61
        $region14: #{bottle2neck_forward.1} parent=11 // pred_check_branch
          %230 = sbr.rel (%p228) target = $region16
        $region15: #{bottle2neck_forward.1} parent=11 // pred_region
          _
        $region16: #{bottle2neck_forward.1} parent=11 // pred_fallthru
          _
        // Predicated region
        $region17: #{bottle2neck_forward.1} parent=11 // pred_check
          %p231 = pneg %p82
        $region18: #{bottle2neck_forward.1} parent=11 // pred_check_branch
          %233 = sbr.rel (%p231) target = $region20
        $region19: #{bottle2neck_forward.1} parent=11 // pred_region
          _
        $region20: #{bottle2neck_forward.1} parent=11 // pred_fallthru
          _
        // Predicated region
        $region21: #{bottle2neck_forward.1} parent=11 // pred_check
          %p234 = pneg %p103
        $region22: #{bottle2neck_forward.1} parent=11 // pred_check_branch
          %236 = sbr.rel (%p234) target = $region24
        $region23: #{bottle2neck_forward.1} parent=11 // pred_region
          _
        $region24: #{bottle2neck_forward.1} parent=11 // pred_fallthru
          _
        // Predicated region
        $region25: #{bottle2neck_forward.1} parent=11 // pred_check
          %p237 = pneg %p124
        $region26: #{bottle2neck_forward.1} parent=11 // pred_check_branch
          %239 = sbr.rel (%p237) target = $region28
        $region27: #{bottle2neck_forward.1} parent=11 // pred_region
          _
        $region28: #{bottle2neck_forward.1} parent=11 // pred_fallthru
          _
        // Predicated region
        $region29: #{bottle2neck_forward.1} parent=11 // pred_check
          %p240 = pneg %p145
        $region30: #{bottle2neck_forward.1} parent=11 // pred_check_branch
          %242 = sbr.rel (%p240) target = $region32
        $region31: #{bottle2neck_forward.1} parent=11 // pred_region
          _
        $region32: #{bottle2neck_forward.1} parent=11 // pred_fallthru
          _
        // Predicated region
        $region33: #{bottle2neck_forward.1} parent=11 // pred_check
          %p243 = pneg %p166
        $region34: #{bottle2neck_forward.1} parent=11 // pred_check_branch
          %245 = sbr.rel (%p243) target = $region36
        $region35: #{bottle2neck_forward.1} parent=11 // pred_region
          _
        $region36: #{bottle2neck_forward.1} parent=11 // pred_fallthru
          _
        // Predicated region
        $region37: #{bottle2neck_forward.1} parent=11 // pred_check
          %p246 = pneg %p187
        $region38: #{bottle2neck_forward.1} parent=11 // pred_check_branch
          %248 = sbr.rel (%p246) target = $region40
        $region39: #{bottle2neck_forward.1} parent=11 // pred_region
          _
        $region40: #{bottle2neck_forward.1} parent=11 // pred_fallthru
          _
      $region12: #{bottle2neck_forward.1} parent=5 // pred_fallthru
        _
      %p249 = scmp.lt.s32.totalorder %s14, 2
      // Predicated region
      $region41: #{bottle2neck_forward.1} parent=5 // pred_check
        %p250 = pneg %p249
      $region42: #{bottle2neck_forward.1} parent=5 // pred_check_branch
        %252 = sbr.rel (%p250) target = $region44
      $region43: #{bottle2neck_forward.1} parent=5 // pred_region
        // Predicated region
        $region45: #{bottle2neck_forward.1} parent=43 // pred_check
          %p253 = pneg %p34
        $region46: #{bottle2neck_forward.1} parent=43 // pred_check_branch
          %255 = sbr.rel (%p253) target = $region48
        $region47: #{bottle2neck_forward.1} parent=43 // pred_region
          %s256 = sand.u32 %s24, 1
          %s257 = sand.u32 %s24, 1
          %s258 = smul.addr %s257, 128
          %s259 = scalar_lea.vmem [#allocation5], %s258
          %s260 = smul.u32 2, %s14
          %s261 = smul.addr %s260, 8
          %s262 = scalar_lea.vmem %s0, %s261
          // Predicated region
          $region49: #{bottle2neck_forward.1} parent=47 // pred_check
            _
          $region50: #{bottle2neck_forward.1} parent=47 // pred_check_branch
            %264 = sbr.rel (0) target = $region52
          $region51: #{bottle2neck_forward.1} parent=47 // pred_region
            // Predicated region
            $region53: #{bottle2neck_forward.1} parent=51 // pred_check
              _
            $region54: #{bottle2neck_forward.1} parent=51 // pred_check_branch
              %266 = sbr.rel (0) target = $region56
            $region55: #{bottle2neck_forward.1} parent=51 // pred_region
              loop: start=0, step=1, limit=1
              $region57: #{bottle2neck_forward.1} parent=55 // loop_pre_header
                _
              $region58: #{bottle2neck_forward.1} parent=55 // loop_header
                %s268 = sphi 0, %s272
                %p269 = scmp.ge.s32.totalorder %s268, 1
                %s273 = sphi %s262, %s262
                %s274 = sphi %s259, %s259
              $region59: #{bottle2neck_forward.1} parent=55 // loop_header_branch
                %271 = sbr.rel (%p269) target = $region63
              $region60: #{bottle2neck_forward.1} parent=55 // loop_body
                %v275 = vld [vmem:[%s273] sm:$0xff]
                %276 = vst [vmem:[%s274] sm:$0xff] %v275
                %v277 = vld [vmem:[%s273 + $0x8] sm:$0xff]
                %278 = vst [vmem:[%s274 + $0x8] sm:$0xff] %v277
                %v279 = vld [vmem:[%s273 + $0x20] sm:$0xff]
                %280 = vst [vmem:[%s274 + $0x10] sm:$0xff] %v279
                %v281 = vld [vmem:[%s273 + $0x28] sm:$0xff]
                %282 = vst [vmem:[%s274 + $0x18] sm:$0xff] %v281
                %v283 = vld [vmem:[%s273 + $0x40] sm:$0xff]
                %284 = vst [vmem:[%s274 + $0x20] sm:$0xff] %v283
                %v285 = vld [vmem:[%s273 + $0x48] sm:$0xff]
                %286 = vst [vmem:[%s274 + $0x28] sm:$0xff] %v285
                %v287 = vld [vmem:[%s273 + $0x60] sm:$0xff]
                %288 = vst [vmem:[%s274 + $0x30] sm:$0xff] %v287
                %v289 = vld [vmem:[%s273 + $0x68] sm:$0xff]
                %290 = vst [vmem:[%s274 + $0x38] sm:$0xff] %v289
                %v291 = vld [vmem:[%s273 + $0x80] sm:$0xff]
                %292 = vst [vmem:[%s274 + $0x40] sm:$0xff] %v291
                %v293 = vld [vmem:[%s273 + $0x88] sm:$0xff]
                %294 = vst [vmem:[%s274 + $0x48] sm:$0xff] %v293
                %v295 = vld [vmem:[%s273 + $0xa0] sm:$0xff]
                %296 = vst [vmem:[%s274 + $0x50] sm:$0xff] %v295
                %v297 = vld [vmem:[%s273 + $0xa8] sm:$0xff]
                %298 = vst [vmem:[%s274 + $0x58] sm:$0xff] %v297
                %v299 = vld [vmem:[%s273 + $0xc0] sm:$0xff]
                %300 = vst [vmem:[%s274 + $0x60] sm:$0xff] %v299
                %v301 = vld [vmem:[%s273 + $0xc8] sm:$0xff]
                %302 = vst [vmem:[%s274 + $0x68] sm:$0xff] %v301
                %v303 = vld [vmem:[%s273 + $0xe0] sm:$0xff]
                %304 = vst [vmem:[%s274 + $0x70] sm:$0xff] %v303
                %v305 = vld [vmem:[%s273 + $0xe8] sm:$0xff]
                %306 = vst [vmem:[%s274 + $0x78] sm:$0xff] %v305
              $region61: #{bottle2neck_forward.1} parent=55 // loop_footer
                %s272 = sadd.s32 1, %s268
              $region62: #{bottle2neck_forward.1} parent=55 // loop_footer_branch
                %267 = sbr.rel target = $region58
              $region63: #{bottle2neck_forward.1} parent=55 // loop_exit
                _
            $region56: #{bottle2neck_forward.1} parent=51 // pred_fallthru
              _
            // Predicated region
            $region64: #{bottle2neck_forward.1} parent=51 // pred_check
              _
            $region65: #{bottle2neck_forward.1} parent=51 // pred_check_branch
              %308 = sbr.rel target = $region67
            $region66: #{bottle2neck_forward.1} parent=51 // pred_region
              _
            $region67: #{bottle2neck_forward.1} parent=51 // pred_fallthru
              _
          $region52: #{bottle2neck_forward.1} parent=47 // pred_fallthru
            _
          %309 = vnop
        $region48: #{bottle2neck_forward.1} parent=43 // pred_fallthru
          _
      $region44: #{bottle2neck_forward.1} parent=5 // pred_fallthru
        _
      %p310 = scmp.le.s32.totalorder 1, %s14
      %p311 = scmp.lt.s32.totalorder %s14, 3
      %p312 = pnand %p310, %p311
      %p313 = pneg %p312
      // Predicated region
      $region68: #{bottle2neck_forward.1} parent=5 // pred_check
        _
      $region69: #{bottle2neck_forward.1} parent=5 // pred_check_branch
        %315 = sbr.rel (%p312) target = $region71
      $region70: #{bottle2neck_forward.1} parent=5 // pred_region
        %s316 = ssub.s32 %s14, 1
        %s317 = sand.u32 %s27, 1
        %s318 = sand.u32 %s27, 1
        %s319 = smul.addr %s318, 128
        %s320 = scalar_lea.vmem [#allocation5], %s319
        // Predicated region
        $region72: #{bottle2neck_forward.1} parent=70 // pred_check
          %p321 = pneg %p40
        $region73: #{bottle2neck_forward.1} parent=70 // pred_check_branch
          %323 = sbr.rel (%p321) target = $region75
        $region74: #{bottle2neck_forward.1} parent=70 // pred_region
          _
        $region75: #{bottle2neck_forward.1} parent=70 // pred_fallthru
          _
        %s324 = sand.u32 %s27, 1
        %s325 = sand.u32 %s27, 1
        %s326 = smul.addr %s325, 128
        %s327 = scalar_lea.vmem [#allocation5], %s326
        %p328 = pneg %p40
        %p329 = pneg %p37
        %p330 = pneg %p61
        %p331 = pneg %p58
        %p332 = pneg %p82
        %p333 = pneg %p79
        %p334 = pneg %p103
        %p335 = pneg %p100
        %p336 = pneg %p124
        %p337 = pneg %p121
        %p338 = pneg %p145
        %p339 = pneg %p142
        %p340 = pneg %p166
        %p341 = pneg %p163
        %p342 = pneg %p187
        %p343 = pneg %p184
        %p344 = pneg %p213
        %p345 = pneg %p210
        %s346 = sand.u32 %s200, 1
        %s347 = sand.u32 %s200, 1
        %s348 = smul.addr %s347, 128
        %s349 = scalar_lea.vmem [#allocation6], %s348
        %s350 = smul.u32 2, %s19
        %s351 = smul.u32 2, %s19
        %v352 = vld [vmem:[%s2] sm:$0xff]
        %v353 = vld [vmem:[%s2 + $0x8] sm:$0xff]
        %v354 = vld [vmem:[%s2 + $0x10] sm:$0xff]
        %v355 = vld [vmem:[%s2 + $0x18] sm:$0xff]
        %v356 = vld [vmem:[%s320] sm:$0xff]
        %v357 = vld [vmem:[%s320 + $0x8] sm:$0xff]
        %v358 = vld [vmem:[%s320 + $0x10] sm:$0xff]
        %v359 = vld [vmem:[%s320 + $0x18] sm:$0xff]
        %v360 = vld [vmem:[%s320 + $0x20] sm:$0xff]
        %v361 = vld [vmem:[%s320 + $0x28] sm:$0xff]
        %v362 = vld [vmem:[%s320 + $0x30] sm:$0xff]
        %v363 = vld [vmem:[%s320 + $0x38] sm:$0xff]
        %v364 = vld [vmem:[%s320 + $0x40] sm:$0xff]
        %v365 = vld [vmem:[%s320 + $0x48] sm:$0xff]
        %v366 = vld [vmem:[%s320 + $0x50] sm:$0xff]
        %v367 = vld [vmem:[%s320 + $0x58] sm:$0xff]
        %v368 = vld [vmem:[%s320 + $0x60] sm:$0xff]
        %v369 = vld [vmem:[%s320 + $0x68] sm:$0xff]
        %v370 = vld [vmem:[%s320 + $0x70] sm:$0xff]
        %v371 = vld [vmem:[%s320 + $0x78] sm:$0xff]
        %v372 = vld [vmem:[%s3] sm:$0xff]
        %v373 = vld [vmem:[%s3 + $0x8] sm:$0xff]
        %v374 = vld [vmem:[%s3 + $0x10] sm:$0xff]
        %v375 = vld [vmem:[%s3 + $0x18] sm:$0xff]
        %377 = vset.pattern.permute.xlu0 0
        %378 = vperm.xlu0 %377, %v372
        %v379 = vpop.permute.xlu0 %378
        %382 = vset.pattern.permute.xlu0 0
        %383 = vperm.xlu0 %382, %v373
        %v384 = vpop.permute.xlu0 %383
        %387 = vset.pattern.permute.xlu0 0
        %388 = vperm.xlu0 %387, %v374
        %v389 = vpop.permute.xlu0 %388
        %392 = vset.pattern.permute.xlu0 0
        %393 = vperm.xlu0 %392, %v375
        %v394 = vpop.permute.xlu0 %393
        %vm396 = vcmask 523264
        %v398 = vsel %vm396, %v352, 0
        %v401 = vsel %vm396, %v353, 0
        %v404 = vsel %vm396, %v354, 0
        %v407 = vsel %vm396, %v355, 0
        %409 = vmatpush.msra.mxu0 0.0
        %410 = vmatpush.msra.mxu0 0.0
        %411 = vmatpush.msra.mxu0 0.0
        %412 = vmatpush.msra.mxu0 0.0
        %413 = vmatpush.msra.mxu0 0.0
        %414 = vmatpush.msra.mxu0 0.0
        %415 = vmatpush.msra.mxu0 0.0
        %416 = vmatpush.msra.mxu0 0.0
        %417 = vmatpush.msra.mxu0 %v370
        %418 = vmatpush.msra.mxu0 %v368
        %419 = vmatpush.msra.mxu0 %v366
        %420 = vmatpush.msra.mxu0 %v364
        %421 = vmatpush.msra.mxu0 %v362
        %422 = vmatpush.msra.mxu0 %v360
        %423 = vmatpush.msra.mxu0 %v358
        %424 = vmatpush.msra.mxu0 %v356
        %425 = vmatmul.f32.gmra.mxu0 %v398
        %v426 = vpop.f32.mrf.mxu0
        %v427 = vadd.f32 %v379, %v426
        %428 = vmatmul.f32.gmra.mxu0 %v401
        %v429 = vpop.f32.mrf.mxu0
        %v430 = vadd.f32 %v384, %v429
        %431 = vmatmul.f32.gmra.mxu0 %v404
        %v432 = vpop.f32.mrf.mxu0
        %v433 = vadd.f32 %v389, %v432
        %434 = vmatmul.f32.gmra.mxu0 %v407
        %v435 = vpop.f32.mrf.mxu0
        %v436 = vadd.f32 %v394, %v435
        %437 = vdwg.mxu0
        %438 = vmatpush.msra.mxu0 0.0
        %439 = vmatpush.msra.mxu0 0.0
        %440 = vmatpush.msra.mxu0 0.0
        %441 = vmatpush.msra.mxu0 0.0
        %442 = vmatpush.msra.mxu0 0.0
        %443 = vmatpush.msra.mxu0 0.0
        %444 = vmatpush.msra.mxu0 0.0
        %445 = vmatpush.msra.mxu0 0.0
        %446 = vmatpush.msra.mxu0 %v371
        %447 = vmatpush.msra.mxu0 %v369
        %448 = vmatpush.msra.mxu0 %v367
        %449 = vmatpush.msra.mxu0 %v365
        %450 = vmatpush.msra.mxu0 %v363
        %451 = vmatpush.msra.mxu0 %v361
        %452 = vmatpush.msra.mxu0 %v359
        %453 = vmatpush.msra.mxu0 %v357
        %454 = vmatmul.f32.gmra.mxu0 %v398
        %v455 = vpop.f32.mrf.mxu0
        %v456 = vadd.f32 %v379, %v455
        %457 = vmatmul.f32.gmra.mxu0 %v401
        %v458 = vpop.f32.mrf.mxu0
        %v459 = vadd.f32 %v384, %v458
        %460 = vmatmul.f32.gmra.mxu0 %v404
        %v461 = vpop.f32.mrf.mxu0
        %v462 = vadd.f32 %v389, %v461
        %463 = vmatmul.f32.gmra.mxu0 %v407
        %v464 = vpop.f32.mrf.mxu0
        %v465 = vadd.f32 %v394, %v464
        %466 = vdwg.mxu0
        %v467 = vmax.f32 %v427, 0.0
        %v468 = vmax.f32 %v456, 0.0
        %v469 = vmax.f32 %v430, 0.0
        %v470 = vmax.f32 %v459, 0.0
        %v471 = vmax.f32 %v433, 0.0
        %v472 = vmax.f32 %v462, 0.0
        %v473 = vmax.f32 %v436, 0.0
        %v474 = vmax.f32 %v465, 0.0
        %475 = vst [vmem:[#allocation2] sm:$0xff] %v467
        %476 = vst [vmem:[#allocation2 + $0x8] sm:$0xff] %v468
        %477 = vst [vmem:[#allocation2 + $0x10] sm:$0xff] %v469
        %478 = vst [vmem:[#allocation2 + $0x18] sm:$0xff] %v470
        %479 = vst [vmem:[#allocation2 + $0x20] sm:$0xff] %v471
        %480 = vst [vmem:[#allocation2 + $0x28] sm:$0xff] %v472
        %481 = vst [vmem:[#allocation2 + $0x30] sm:$0xff] %v473
        %482 = vst [vmem:[#allocation2 + $0x38] sm:$0xff] %v474
        %s483 = scalar_lea.vmem %s6, 192
        %v484 = vld [vmem:[%s483] sm:$0xff]
        %v485 = vld [vmem:[%s483 + $0x8] sm:$0xff]
        %v486 = vld [vmem:[%s483 + $0x10] sm:$0xff]
        %v487 = vld [vmem:[%s483 + $0x18] sm:$0xff]
        %v488 = vld [vmem:[%s483 + $0x20] sm:$0xff]
        %v489 = vld [vmem:[%s483 + $0x28] sm:$0xff]
        %v490 = vld [vmem:[%s483 + $0x30] sm:$0xff]
        %v491 = vld [vmem:[%s483 + $0x38] sm:$0xff]
        %v492 = vld [vmem:[#allocation2 + $0x30] sm:$0xff]
        %v493 = vld [vmem:[#allocation2 + $0x38] sm:$0xff]
        %vm494 = vcmask 64512
        %v496 = vsel %vm494, %v484, 0
        %v499 = vsel %vm494, %v485, 0
        %v502 = vsel %vm494, %v486, 0
        %v505 = vsel %vm494, %v487, 0
        %v508 = vsel %vm494, %v488, 0
        %v511 = vsel %vm494, %v489, 0
        %v514 = vsel %vm494, %v490, 0
        %v517 = vsel %vm494, %v491, 0
        %519 = vmatpush.msra.mxu0 0.0
        %520 = vmatpush.msra.mxu0 0.0
        %521 = vmatpush.msra.mxu0 0.0
        %522 = vmatpush.msra.mxu0 0.0
        %523 = vmatpush.msra.mxu0 0.0
        %524 = vmatpush.msra.mxu0 0.0
        %525 = vmatpush.msra.mxu0 0.0
        %526 = vmatpush.msra.mxu0 0.0
        %527 = vmatpush.msra.mxu0 0.0
        %528 = vmatpush.msra.mxu0 0.0
        %529 = vmatpush.msra.mxu0 0.0
        %530 = vmatpush.msra.mxu0 0.0
        %531 = vmatpush.msra.mxu0 0.0
        %532 = vmatpush.msra.mxu0 0.0
        %533 = vmatpush.msra.mxu0 0.0
        %534 = vmatpush.msra.mxu0 %v492
        %535 = vmatmul.f32.gmra.mxu0 %v496
        %v536 = vpop.f32.mrf.mxu0
        %v537 = vadd.f32 0.0, %v536
        %538 = vmatmul.f32.gmra.mxu0 %v499
        %v539 = vpop.f32.mrf.mxu0
        %v540 = vadd.f32 0.0, %v539
        %541 = vmatmul.f32.gmra.mxu0 %v502
        %v542 = vpop.f32.mrf.mxu0
        %v543 = vadd.f32 0.0, %v542
        %544 = vmatmul.f32.gmra.mxu0 %v505
        %v545 = vpop.f32.mrf.mxu0
        %v546 = vadd.f32 0.0, %v545
        %547 = vmatmul.f32.gmra.mxu0 %v508
        %v548 = vpop.f32.mrf.mxu0
        %v549 = vadd.f32 0.0, %v548
        %550 = vmatmul.f32.gmra.mxu0 %v511
        %v551 = vpop.f32.mrf.mxu0
        %v552 = vadd.f32 0.0, %v551
        %553 = vmatmul.f32.gmra.mxu0 %v514
        %v554 = vpop.f32.mrf.mxu0
        %v555 = vadd.f32 0.0, %v554
        %556 = vmatmul.f32.gmra.mxu0 %v517
        %v557 = vpop.f32.mrf.mxu0
        %v558 = vadd.f32 0.0, %v557
        %559 = vdwg.mxu0
        %560 = vmatpush.msra.mxu0 0.0
        %561 = vmatpush.msra.mxu0 0.0
        %562 = vmatpush.msra.mxu0 0.0
        %563 = vmatpush.msra.mxu0 0.0
        %564 = vmatpush.msra.mxu0 0.0
        %565 = vmatpush.msra.mxu0 0.0
        %566 = vmatpush.msra.mxu0 0.0
        %567 = vmatpush.msra.mxu0 0.0
        %568 = vmatpush.msra.mxu0 0.0
        %569 = vmatpush.msra.mxu0 0.0
        %570 = vmatpush.msra.mxu0 0.0
        %571 = vmatpush.msra.mxu0 0.0
        %572 = vmatpush.msra.mxu0 0.0
        %573 = vmatpush.msra.mxu0 0.0
        %574 = vmatpush.msra.mxu0 0.0
        %575 = vmatpush.msra.mxu0 %v493
        %576 = vmatmul.f32.gmra.mxu0 %v496
        %v577 = vpop.f32.mrf.mxu0
        %v578 = vadd.f32 0.0, %v577
        %579 = vmatmul.f32.gmra.mxu0 %v499
        %v580 = vpop.f32.mrf.mxu0
        %v581 = vadd.f32 0.0, %v580
        %582 = vmatmul.f32.gmra.mxu0 %v502
        %v583 = vpop.f32.mrf.mxu0
        %v584 = vadd.f32 0.0, %v583
        %585 = vmatmul.f32.gmra.mxu0 %v505
        %v586 = vpop.f32.mrf.mxu0
        %v587 = vadd.f32 0.0, %v586
        %588 = vmatmul.f32.gmra.mxu0 %v508
        %v589 = vpop.f32.mrf.mxu0
        %v590 = vadd.f32 0.0, %v589
        %591 = vmatmul.f32.gmra.mxu0 %v511
        %v592 = vpop.f32.mrf.mxu0
        %v593 = vadd.f32 0.0, %v592
        %594 = vmatmul.f32.gmra.mxu0 %v514
        %v595 = vpop.f32.mrf.mxu0
        %v596 = vadd.f32 0.0, %v595
        %597 = vmatmul.f32.gmra.mxu0 %v517
        %v598 = vpop.f32.mrf.mxu0
        %v599 = vadd.f32 0.0, %v598
        %600 = vdwg.mxu0
        %601 = vst [vmem:[#allocation4] sm:$0xff] %v537
        %602 = vst [vmem:[#allocation4 + $0x8] sm:$0xff] %v578
        %603 = vst [vmem:[#allocation4 + $0x10] sm:$0xff] %v540
        %604 = vst [vmem:[#allocation4 + $0x18] sm:$0xff] %v581
        %605 = vst [vmem:[#allocation4 + $0x20] sm:$0xff] %v543
        %606 = vst [vmem:[#allocation4 + $0x28] sm:$0xff] %v584
        %607 = vst [vmem:[#allocation4 + $0x30] sm:$0xff] %v546
        %608 = vst [vmem:[#allocation4 + $0x38] sm:$0xff] %v587
        %609 = vst [vmem:[#allocation4 + $0x40] sm:$0xff] %v549
        %610 = vst [vmem:[#allocation4 + $0x48] sm:$0xff] %v590
        %611 = vst [vmem:[#allocation4 + $0x50] sm:$0xff] %v552
        %612 = vst [vmem:[#allocation4 + $0x58] sm:$0xff] %v593
        %613 = vst [vmem:[#allocation4 + $0x60] sm:$0xff] %v555
        %614 = vst [vmem:[#allocation4 + $0x68] sm:$0xff] %v596
        %615 = vst [vmem:[#allocation4 + $0x70] sm:$0xff] %v558
        %616 = vst [vmem:[#allocation4 + $0x78] sm:$0xff] %v599
        %v617 = vld [vmem:[#allocation2] sm:$0xff]
        %v618 = vld [vmem:[#allocation2 + $0x8] sm:$0xff]
        %619 = vrot.lane.b32.xlu0 %v617, 17
        %v620 = vpop.permute.xlu0 %619
        %621 = vrot.lane.b32.xlu0 %v618, 17
        %v622 = vpop.permute.xlu0 %621
        %v623 = vlaneseq
        %v624 = vand.u32 %v623, 127
        %vm625 = vcmp.lt.s32.totalorder %v624, 17
        %v626 = vsel %vm625, %v620, %v622
        %v627 = vsel %vm625, %v622, %v620
        %v628 = vld [vmem:[%s1] ss:$8 sm:$0x3]
        %v630 = vperm.slane %v628, 0
        %v631 = vperm.slane %v628, 1
        %v634 = vmul.f32 %v627, %v630
        %v635 = vmul.f32 %v626, %v631
        %636 = vst [vmem:[#allocation3] sm:$0xff] %v634
        %637 = vst [vmem:[#allocation3 + $0x8] sm:$0xff] %v635
        %638 = vrot.lane.b32.xlu0 %v617, 16
        %v639 = vpop.permute.xlu0 %638
        %640 = vrot.lane.b32.xlu0 %v618, 16
        %v641 = vpop.permute.xlu0 %640
        %vm642 = vcmp.lt.s32.totalorder %v624, 16
        %v643 = vsel %vm642, %v639, %v641
        %v644 = vsel %vm642, %v641, %v639
        %s645 = scalar_lea.vmem %s1, 1
        %v646 = vld [vmem:[%s645] ss:$8 sm:$0x3]
        %v648 = vperm.slane %v646, 0
        %v649 = vperm.slane %v646, 1
        %v652 = vmul.f32 %v644, %v648
        %v653 = vmul.f32 %v643, %v649
        %654 = vst [vmem:[#allocation3 + $0x10] sm:$0xff] %v652
        %655 = vst [vmem:[#allocation3 + $0x18] sm:$0xff] %v653
        %656 = vrot.lane.b32.xlu0 %v617, 15
        %v657 = vpop.permute.xlu0 %656
        %658 = vrot.lane.b32.xlu0 %v618, 15
        %v659 = vpop.permute.xlu0 %658
        %vm660 = vcmp.lt.s32.totalorder %v624, 15
        %v661 = vsel %vm660, %v657, %v659
        %v662 = vsel %vm660, %v659, %v657
        %s663 = scalar_lea.vmem %s1, 2
        %v664 = vld [vmem:[%s663] ss:$8 sm:$0x3]
        %v666 = vperm.slane %v664, 0
        %v667 = vperm.slane %v664, 1
        %v670 = vmul.f32 %v662, %v666
        %v671 = vmul.f32 %v661, %v667
        %672 = vst [vmem:[#allocation3 + $0x20] sm:$0xff] %v670
        %673 = vst [vmem:[#allocation3 + $0x28] sm:$0xff] %v671
        %674 = vrot.lane.b32.xlu0 %v617, 1
        %v675 = vpop.permute.xlu0 %674
        %676 = vrot.lane.b32.xlu0 %v618, 1
        %v677 = vpop.permute.xlu0 %676
        %vm678 = vcmp.lt.s32.totalorder %v624, 1
        %v679 = vsel %vm678, %v675, %v677
        %v680 = vsel %vm678, %v677, %v675
        %s681 = scalar_lea.vmem %s1, 3
        %v682 = vld [vmem:[%s681] ss:$8 sm:$0x3]
        %v684 = vperm.slane %v682, 0
        %v685 = vperm.slane %v682, 1
        %v688 = vmul.f32 %v680, %v684
        %v689 = vmul.f32 %v679, %v685
        %690 = vst [vmem:[#allocation3 + $0x30] sm:$0xff] %v688
        %691 = vst [vmem:[#allocation3 + $0x38] sm:$0xff] %v689
        %692 = vst [vmem:[#allocation3 + $0x40] sm:$0xff] %v617
        %693 = vst [vmem:[#allocation3 + $0x48] sm:$0xff] %v618
        %694 = vrot.lane.b32.xlu0 %v617, 127
        %v695 = vpop.permute.xlu0 %694
        %696 = vrot.lane.b32.xlu0 %v618, 127
        %v697 = vpop.permute.xlu0 %696
        %vm698 = vcmp.lt.s32.totalorder %v624, 127
        %v699 = vsel %vm698, %v695, %v697
        %v700 = vsel %vm698, %v697, %v695
        %s701 = scalar_lea.vmem %s1, 5
        %v702 = vld [vmem:[%s701] ss:$8 sm:$0x3]
        %v704 = vperm.slane %v702, 0
        %v705 = vperm.slane %v702, 1
        %v708 = vmul.f32 %v699, %v704
        %v709 = vmul.f32 %v700, %v705
        %710 = vst [vmem:[#allocation3 + $0x50] sm:$0xff] %v708
        %711 = vst [vmem:[#allocation3 + $0x58] sm:$0xff] %v709
        %712 = vrot.lane.b32.xlu0 %v617, 113
        %v713 = vpop.permute.xlu0 %712
        %714 = vrot.lane.b32.xlu0 %v618, 113
        %v715 = vpop.permute.xlu0 %714
        %vm716 = vcmp.lt.s32.totalorder %v624, 113
        %v717 = vsel %vm716, %v713, %v715
        %v718 = vsel %vm716, %v715, %v713
        %s719 = scalar_lea.vmem %s1, 6
        %v720 = vld [vmem:[%s719] ss:$8 sm:$0x3]
        %v722 = vperm.slane %v720, 0
        %v723 = vperm.slane %v720, 1
        %v726 = vmul.f32 %v717, %v722
        %v727 = vmul.f32 %v718, %v723
        %728 = vst [vmem:[#allocation3 + $0x60] sm:$0xff] %v726
        %729 = vst [vmem:[#allocation3 + $0x68] sm:$0xff] %v727
        %730 = vrot.lane.b32.xlu0 %v617, 112
        %v731 = vpop.permute.xlu0 %730
        %732 = vrot.lane.b32.xlu0 %v618, 112
        %v733 = vpop.permute.xlu0 %732
        %vm734 = vcmp.lt.s32.totalorder %v624, 112
        %v735 = vsel %vm734, %v731, %v733
        %v736 = vsel %vm734, %v733, %v731
        %s737 = scalar_lea.vmem %s1, 7
        %v738 = vld [vmem:[%s737] ss:$8 sm:$0x3]
        %v740 = vperm.slane %v738, 0
        %v741 = vperm.slane %v738, 1
        %v744 = vmul.f32 %v735, %v740
        %v745 = vmul.f32 %v736, %v741
        %746 = vst [vmem:[#allocation3 + $0x70] sm:$0xff] %v744
        %747 = vst [vmem:[#allocation3 + $0x78] sm:$0xff] %v745
        %748 = vrot.lane.b32.xlu0 %v617, 111
        %v749 = vpop.permute.xlu0 %748
        %750 = vrot.lane.b32.xlu0 %v618, 111
        %v751 = vpop.permute.xlu0 %750
        %vm752 = vcmp.lt.s32.totalorder %v624, 111
        %v753 = vsel %vm752, %v749, %v751
        %v754 = vsel %vm752, %v751, %v749
        %s755 = scalar_lea.vmem %s1, 16
        %v756 = vld [vmem:[%s755] ss:$8 sm:$0x3]
        %v758 = vperm.slane %v756, 0
        %v759 = vperm.slane %v756, 1
        %v762 = vmul.f32 %v753, %v758
        %v763 = vmul.f32 %v754, %v759
        %764 = vst [vmem:[#allocation3 + $0x80] sm:$0xff] %v762
        %765 = vst [vmem:[#allocation3 + $0x88] sm:$0xff] %v763
        %v766 = vld [vmem:[%s4] sm:$0xff]
        %v767 = vld [vmem:[#allocation3] sm:$0xff]
        %v768 = vld [vmem:[#allocation3 + $0x8] sm:$0xff]
        %v769 = vld [vmem:[#allocation3 + $0x10] sm:$0xff]
        %v770 = vld [vmem:[#allocation3 + $0x18] sm:$0xff]
        %v771 = vld [vmem:[#allocation3 + $0x20] sm:$0xff]
        %v772 = vld [vmem:[#allocation3 + $0x28] sm:$0xff]
        %v773 = vld [vmem:[#allocation3 + $0x30] sm:$0xff]
        %v774 = vld [vmem:[#allocation3 + $0x38] sm:$0xff]
        %v775 = vld [vmem:[#allocation3 + $0x40] sm:$0xff]
        %v776 = vld [vmem:[#allocation3 + $0x48] sm:$0xff]
        %v777 = vld [vmem:[#allocation3 + $0x50] sm:$0xff]
        %v778 = vld [vmem:[#allocation3 + $0x58] sm:$0xff]
        %v779 = vld [vmem:[#allocation3 + $0x60] sm:$0xff]
        %v780 = vld [vmem:[#allocation3 + $0x68] sm:$0xff]
        %v781 = vld [vmem:[#allocation3 + $0x70] sm:$0xff]
        %v782 = vld [vmem:[#allocation3 + $0x78] sm:$0xff]
        %v783 = vld [vmem:[#allocation3 + $0x80] sm:$0xff]
        %v784 = vld [vmem:[#allocation3 + $0x88] sm:$0xff]
        %v785 = vld [vmem:[%s5] sm:$0xff]
        %787 = vset.pattern.permute.xlu0 0
        %788 = vperm.xlu0 %787, %v785
        %v789 = vpop.permute.xlu0 %788
        %vm791 = vcmask 588800
        %v793 = vsel %vm791, %v766, 0
        %795 = vmatpush.msra.mxu0 0.0
        %796 = vmatpush.msra.mxu0 0.0
        %797 = vmatpush.msra.mxu0 0.0
        %798 = vmatpush.msra.mxu0 0.0
        %799 = vmatpush.msra.mxu0 0.0
        %800 = vmatpush.msra.mxu0 0.0
        %801 = vmatpush.msra.mxu0 0.0
        %802 = vmatpush.msra.mxu0 %v783
        %803 = vmatpush.msra.mxu0 %v781
        %804 = vmatpush.msra.mxu0 %v779
        %805 = vmatpush.msra.mxu0 %v777
        %806 = vmatpush.msra.mxu0 %v775
        %807 = vmatpush.msra.mxu0 %v773
        %808 = vmatpush.msra.mxu0 %v771
        %809 = vmatpush.msra.mxu0 %v769
        %810 = vmatpush.msra.mxu0 %v767
        %811 = vmatmul.f32.gmra.mxu0 %v793
        %v812 = vpop.f32.mrf.mxu0
        %v813 = vadd.f32 %v789, %v812
        %814 = vdwg.mxu0
        %815 = vmatpush.msra.mxu0 0.0
        %816 = vmatpush.msra.mxu0 0.0
        %817 = vmatpush.msra.mxu0 0.0
        %818 = vmatpush.msra.mxu0 0.0
        %819 = vmatpush.msra.mxu0 0.0
        %820 = vmatpush.msra.mxu0 0.0
        %821 = vmatpush.msra.mxu0 0.0
        %822 = vmatpush.msra.mxu0 %v784
        %823 = vmatpush.msra.mxu0 %v782
        %824 = vmatpush.msra.mxu0 %v780
        %825 = vmatpush.msra.mxu0 %v778
        %826 = vmatpush.msra.mxu0 %v776
        %827 = vmatpush.msra.mxu0 %v774
        %828 = vmatpush.msra.mxu0 %v772
        %829 = vmatpush.msra.mxu0 %v770
        %830 = vmatpush.msra.mxu0 %v768
        %831 = vmatmul.f32.gmra.mxu0 %v793
        %v832 = vpop.f32.mrf.mxu0
        %v833 = vadd.f32 %v789, %v832
        %834 = vdwg.mxu0
        %v835 = vmax.f32 %v813, 0.0
        %v836 = vmax.f32 %v833, 0.0
        %v837 = vld [vmem:[#allocation4] sm:$0xff]
        %v838 = vld [vmem:[#allocation4 + $0x8] sm:$0xff]
        %v839 = vld [vmem:[#allocation4 + $0x10] sm:$0xff]
        %v840 = vld [vmem:[#allocation4 + $0x18] sm:$0xff]
        %v841 = vld [vmem:[#allocation4 + $0x20] sm:$0xff]
        %v842 = vld [vmem:[#allocation4 + $0x28] sm:$0xff]
        %v843 = vld [vmem:[#allocation4 + $0x30] sm:$0xff]
        %v844 = vld [vmem:[#allocation4 + $0x38] sm:$0xff]
        %v845 = vld [vmem:[#allocation4 + $0x40] sm:$0xff]
        %v846 = vld [vmem:[#allocation4 + $0x48] sm:$0xff]
        %v847 = vld [vmem:[#allocation4 + $0x50] sm:$0xff]
        %v848 = vld [vmem:[#allocation4 + $0x58] sm:$0xff]
        %v849 = vld [vmem:[#allocation4 + $0x60] sm:$0xff]
        %v850 = vld [vmem:[#allocation4 + $0x68] sm:$0xff]
        %v851 = vld [vmem:[#allocation4 + $0x70] sm:$0xff]
        %v852 = vld [vmem:[#allocation4 + $0x78] sm:$0xff]
        %v853 = vld [vmem:[%s6] sm:$0xff]
        %v854 = vld [vmem:[%s6 + $0x8] sm:$0xff]
        %v855 = vld [vmem:[%s6 + $0x10] sm:$0xff]
        %v856 = vld [vmem:[%s6 + $0x18] sm:$0xff]
        %v857 = vld [vmem:[%s6 + $0x20] sm:$0xff]
        %v858 = vld [vmem:[%s6 + $0x28] sm:$0xff]
        %v859 = vld [vmem:[%s6 + $0x30] sm:$0xff]
        %v860 = vld [vmem:[%s6 + $0x38] sm:$0xff]
        %v862 = vsel %vm494, %v853, 0
        %v865 = vsel %vm494, %v854, 0
        %v868 = vsel %vm494, %v855, 0
        %v871 = vsel %vm494, %v856, 0
        %v874 = vsel %vm494, %v857, 0
        %v877 = vsel %vm494, %v858, 0
        %v880 = vsel %vm494, %v859, 0
        %v883 = vsel %vm494, %v860, 0
        %885 = vmatpush.msra.mxu0 0.0
        %886 = vmatpush.msra.mxu0 0.0
        %887 = vmatpush.msra.mxu0 0.0
        %888 = vmatpush.msra.mxu0 0.0
        %889 = vmatpush.msra.mxu0 0.0
        %890 = vmatpush.msra.mxu0 0.0
        %891 = vmatpush.msra.mxu0 0.0
        %892 = vmatpush.msra.mxu0 0.0
        %893 = vmatpush.msra.mxu0 0.0
        %894 = vmatpush.msra.mxu0 0.0
        %895 = vmatpush.msra.mxu0 0.0
        %896 = vmatpush.msra.mxu0 0.0
        %897 = vmatpush.msra.mxu0 0.0
        %898 = vmatpush.msra.mxu0 0.0
        %899 = vmatpush.msra.mxu0 0.0
        %900 = vmatpush.msra.mxu0 %v835
        %901 = vmatmul.f32.gmra.mxu0 %v862
        %v902 = vpop.f32.mrf.mxu0
        %v903 = vadd.f32 0.0, %v902
        %904 = vmatmul.f32.gmra.mxu0 %v865
        %v905 = vpop.f32.mrf.mxu0
        %v906 = vadd.f32 0.0, %v905
        %907 = vmatmul.f32.gmra.mxu0 %v868
        %v908 = vpop.f32.mrf.mxu0
        %v909 = vadd.f32 0.0, %v908
        %910 = vmatmul.f32.gmra.mxu0 %v871
        %v911 = vpop.f32.mrf.mxu0
        %v912 = vadd.f32 0.0, %v911
        %913 = vmatmul.f32.gmra.mxu0 %v874
        %v914 = vpop.f32.mrf.mxu0
        %v915 = vadd.f32 0.0, %v914
        %916 = vmatmul.f32.gmra.mxu0 %v877
        %v917 = vpop.f32.mrf.mxu0
        %v918 = vadd.f32 0.0, %v917
        %919 = vmatmul.f32.gmra.mxu0 %v880
        %v920 = vpop.f32.mrf.mxu0
        %v921 = vadd.f32 0.0, %v920
        %922 = vmatmul.f32.gmra.mxu0 %v883
        %v923 = vpop.f32.mrf.mxu0
        %v924 = vadd.f32 0.0, %v923
        %925 = vdwg.mxu0
        %926 = vmatpush.msra.mxu0 0.0
        %927 = vmatpush.msra.mxu0 0.0
        %928 = vmatpush.msra.mxu0 0.0
        %929 = vmatpush.msra.mxu0 0.0
        %930 = vmatpush.msra.mxu0 0.0
        %931 = vmatpush.msra.mxu0 0.0
        %932 = vmatpush.msra.mxu0 0.0
        %933 = vmatpush.msra.mxu0 0.0
        %934 = vmatpush.msra.mxu0 0.0
        %935 = vmatpush.msra.mxu0 0.0
        %936 = vmatpush.msra.mxu0 0.0
        %937 = vmatpush.msra.mxu0 0.0
        %938 = vmatpush.msra.mxu0 0.0
        %939 = vmatpush.msra.mxu0 0.0
        %940 = vmatpush.msra.mxu0 0.0
        %941 = vmatpush.msra.mxu0 %v836
        %942 = vmatmul.f32.gmra.mxu0 %v862
        %v943 = vpop.f32.mrf.mxu0
        %v944 = vadd.f32 0.0, %v943
        %945 = vmatmul.f32.gmra.mxu0 %v865
        %v946 = vpop.f32.mrf.mxu0
        %v947 = vadd.f32 0.0, %v946
        %948 = vmatmul.f32.gmra.mxu0 %v868
        %v949 = vpop.f32.mrf.mxu0
        %v950 = vadd.f32 0.0, %v949
        %951 = vmatmul.f32.gmra.mxu0 %v871
        %v952 = vpop.f32.mrf.mxu0
        %v953 = vadd.f32 0.0, %v952
        %954 = vmatmul.f32.gmra.mxu0 %v874
        %v955 = vpop.f32.mrf.mxu0
        %v956 = vadd.f32 0.0, %v955
        %957 = vmatmul.f32.gmra.mxu0 %v877
        %v958 = vpop.f32.mrf.mxu0
        %v959 = vadd.f32 0.0, %v958
        %960 = vmatmul.f32.gmra.mxu0 %v880
        %v961 = vpop.f32.mrf.mxu0
        %v962 = vadd.f32 0.0, %v961
        %963 = vmatmul.f32.gmra.mxu0 %v883
        %v964 = vpop.f32.mrf.mxu0
        %v965 = vadd.f32 0.0, %v964
        %966 = vdwg.mxu0
        %v967 = vadd.f32 %v837, %v903
        %v968 = vadd.f32 %v838, %v944
        %v969 = vadd.f32 %v839, %v906
        %v970 = vadd.f32 %v840, %v947
        %v971 = vadd.f32 %v841, %v909
        %v972 = vadd.f32 %v842, %v950
        %v973 = vadd.f32 %v843, %v912
        %v974 = vadd.f32 %v844, %v953
        %v975 = vadd.f32 %v845, %v915
        %v976 = vadd.f32 %v846, %v956
        %v977 = vadd.f32 %v847, %v918
        %v978 = vadd.f32 %v848, %v959
        %v979 = vadd.f32 %v849, %v921
        %v980 = vadd.f32 %v850, %v962
        %v981 = vadd.f32 %v851, %v924
        %v982 = vadd.f32 %v852, %v965
        %983 = vst [vmem:[#allocation4] sm:$0xff] %v967
        %984 = vst [vmem:[#allocation4 + $0x8] sm:$0xff] %v968
        %985 = vst [vmem:[#allocation4 + $0x10] sm:$0xff] %v969
        %986 = vst [vmem:[#allocation4 + $0x18] sm:$0xff] %v970
        %987 = vst [vmem:[#allocation4 + $0x20] sm:$0xff] %v971
        %988 = vst [vmem:[#allocation4 + $0x28] sm:$0xff] %v972
        %989 = vst [vmem:[#allocation4 + $0x30] sm:$0xff] %v973
        %990 = vst [vmem:[#allocation4 + $0x38] sm:$0xff] %v974
        %991 = vst [vmem:[#allocation4 + $0x40] sm:$0xff] %v975
        %992 = vst [vmem:[#allocation4 + $0x48] sm:$0xff] %v976
        %993 = vst [vmem:[#allocation4 + $0x50] sm:$0xff] %v977
        %994 = vst [vmem:[#allocation4 + $0x58] sm:$0xff] %v978
        %995 = vst [vmem:[#allocation4 + $0x60] sm:$0xff] %v979
        %996 = vst [vmem:[#allocation4 + $0x68] sm:$0xff] %v980
        %997 = vst [vmem:[#allocation4 + $0x70] sm:$0xff] %v981
        %998 = vst [vmem:[#allocation4 + $0x78] sm:$0xff] %v982
        %v999 = vld [vmem:[#allocation2 + $0x10] sm:$0xff]
        %v1000 = vld [vmem:[#allocation2 + $0x18] sm:$0xff]
        %v1001 = vadd.f32 %v835, %v999
        %v1002 = vadd.f32 %v836, %v1000
        %1003 = vrot.lane.b32.xlu0 %v1001, 17
        %v1004 = vpop.permute.xlu0 %1003
        %1005 = vrot.lane.b32.xlu0 %v1002, 17
        %v1006 = vpop.permute.xlu0 %1005
        %v1007 = vsel %vm625, %v1004, %v1006
        %v1008 = vsel %vm625, %v1006, %v1004
        %v1009 = vld [vmem:[%s1] ss:$8 sm:$0x3]
        %v1011 = vperm.slane %v1009, 0
        %v1012 = vperm.slane %v1009, 1
        %v1015 = vmul.f32 %v1008, %v1011
        %v1016 = vmul.f32 %v1007, %v1012
        %1017 = vst [vmem:[#allocation3] sm:$0xff] %v1015
        %1018 = vst [vmem:[#allocation3 + $0x8] sm:$0xff] %v1016
        %1019 = vrot.lane.b32.xlu0 %v1001, 16
        %v1020 = vpop.permute.xlu0 %1019
        %1021 = vrot.lane.b32.xlu0 %v1002, 16
        %v1022 = vpop.permute.xlu0 %1021
        %v1023 = vsel %vm642, %v1020, %v1022
        %v1024 = vsel %vm642, %v1022, %v1020
        %v1025 = vld [vmem:[%s645] ss:$8 sm:$0x3]
        %v1027 = vperm.slane %v1025, 0
        %v1028 = vperm.slane %v1025, 1
        %v1031 = vmul.f32 %v1024, %v1027
        %v1032 = vmul.f32 %v1023, %v1028
        %1033 = vst [vmem:[#allocation3 + $0x10] sm:$0xff] %v1031
        %1034 = vst [vmem:[#allocation3 + $0x18] sm:$0xff] %v1032
        %1035 = vrot.lane.b32.xlu0 %v1001, 15
        %v1036 = vpop.permute.xlu0 %1035
        %1037 = vrot.lane.b32.xlu0 %v1002, 15
        %v1038 = vpop.permute.xlu0 %1037
        %v1039 = vsel %vm660, %v1036, %v1038
        %v1040 = vsel %vm660, %v1038, %v1036
        %v1041 = vld [vmem:[%s663] ss:$8 sm:$0x3]
        %v1043 = vperm.slane %v1041, 0
        %v1044 = vperm.slane %v1041, 1
        %v1047 = vmul.f32 %v1040, %v1043
        %v1048 = vmul.f32 %v1039, %v1044
        %1049 = vst [vmem:[#allocation3 + $0x20] sm:$0xff] %v1047
        %1050 = vst [vmem:[#allocation3 + $0x28] sm:$0xff] %v1048
        %1051 = vrot.lane.b32.xlu0 %v1001, 1
        %v1052 = vpop.permute.xlu0 %1051
        %1053 = vrot.lane.b32.xlu0 %v1002, 1
        %v1054 = vpop.permute.xlu0 %1053
        %v1055 = vsel %vm678, %v1052, %v1054
        %v1056 = vsel %vm678, %v1054, %v1052
        %v1057 = vld [vmem:[%s681] ss:$8 sm:$0x3]
        %v1059 = vperm.slane %v1057, 0
        %v1060 = vperm.slane %v1057, 1
        %v1063 = vmul.f32 %v1056, %v1059
        %v1064 = vmul.f32 %v1055, %v1060
        %1065 = vst [vmem:[#allocation3 + $0x30] sm:$0xff] %v1063
        %1066 = vst [vmem:[#allocation3 + $0x38] sm:$0xff] %v1064
        %1067 = vst [vmem:[#allocation3 + $0x40] sm:$0xff] %v1001
        %1068 = vst [vmem:[#allocation3 + $0x48] sm:$0xff] %v1002
        %1069 = vrot.lane.b32.xlu0 %v1001, 127
        %v1070 = vpop.permute.xlu0 %1069
        %1071 = vrot.lane.b32.xlu0 %v1002, 127
        %v1072 = vpop.permute.xlu0 %1071
        %v1073 = vsel %vm698, %v1070, %v1072
        %v1074 = vsel %vm698, %v1072, %v1070
        %v1075 = vld [vmem:[%s701] ss:$8 sm:$0x3]
        %v1077 = vperm.slane %v1075, 0
        %v1078 = vperm.slane %v1075, 1
        %v1081 = vmul.f32 %v1073, %v1077
        %v1082 = vmul.f32 %v1074, %v1078
        %1083 = vst [vmem:[#allocation3 + $0x50] sm:$0xff] %v1081
        %1084 = vst [vmem:[#allocation3 + $0x58] sm:$0xff] %v1082
        %1085 = vrot.lane.b32.xlu0 %v1001, 113
        %v1086 = vpop.permute.xlu0 %1085
        %1087 = vrot.lane.b32.xlu0 %v1002, 113
        %v1088 = vpop.permute.xlu0 %1087
        %v1089 = vsel %vm716, %v1086, %v1088
        %v1090 = vsel %vm716, %v1088, %v1086
        %v1091 = vld [vmem:[%s719] ss:$8 sm:$0x3]
        %v1093 = vperm.slane %v1091, 0
        %v1094 = vperm.slane %v1091, 1
        %v1097 = vmul.f32 %v1089, %v1093
        %v1098 = vmul.f32 %v1090, %v1094
        %1099 = vst [vmem:[#allocation3 + $0x60] sm:$0xff] %v1097
        %1100 = vst [vmem:[#allocation3 + $0x68] sm:$0xff] %v1098
        %1101 = vrot.lane.b32.xlu0 %v1001, 112
        %v1102 = vpop.permute.xlu0 %1101
        %1103 = vrot.lane.b32.xlu0 %v1002, 112
        %v1104 = vpop.permute.xlu0 %1103
        %v1105 = vsel %vm734, %v1102, %v1104
        %v1106 = vsel %vm734, %v1104, %v1102
        %v1107 = vld [vmem:[%s737] ss:$8 sm:$0x3]
        %v1109 = vperm.slane %v1107, 0
        %v1110 = vperm.slane %v1107, 1
        %v1113 = vmul.f32 %v1105, %v1109
        %v1114 = vmul.f32 %v1106, %v1110
        %1115 = vst [vmem:[#allocation3 + $0x70] sm:$0xff] %v1113
        %1116 = vst [vmem:[#allocation3 + $0x78] sm:$0xff] %v1114
        %1117 = vrot.lane.b32.xlu0 %v1001, 111
        %v1118 = vpop.permute.xlu0 %1117
        %1119 = vrot.lane.b32.xlu0 %v1002, 111
        %v1120 = vpop.permute.xlu0 %1119
        %v1121 = vsel %vm752, %v1118, %v1120
        %v1122 = vsel %vm752, %v1120, %v1118
        %v1123 = vld [vmem:[%s755] ss:$8 sm:$0x3]
        %v1125 = vperm.slane %v1123, 0
        %v1126 = vperm.slane %v1123, 1
        %v1129 = vmul.f32 %v1121, %v1125
        %v1130 = vmul.f32 %v1122, %v1126
        %1131 = vst [vmem:[#allocation3 + $0x80] sm:$0xff] %v1129
        %1132 = vst [vmem:[#allocation3 + $0x88] sm:$0xff] %v1130
        %s1133 = scalar_lea.vmem %s4, 8
        %v1134 = vld [vmem:[%s1133] sm:$0xff]
        %v1135 = vld [vmem:[#allocation3] sm:$0xff]
        %v1136 = vld [vmem:[#allocation3 + $0x8] sm:$0xff]
        %v1137 = vld [vmem:[#allocation3 + $0x10] sm:$0xff]
        %v1138 = vld [vmem:[#allocation3 + $0x18] sm:$0xff]
        %v1139 = vld [vmem:[#allocation3 + $0x20] sm:$0xff]
        %v1140 = vld [vmem:[#allocation3 + $0x28] sm:$0xff]
        %v1141 = vld [vmem:[#allocation3 + $0x30] sm:$0xff]
        %v1142 = vld [vmem:[#allocation3 + $0x38] sm:$0xff]
        %v1143 = vld [vmem:[#allocation3 + $0x40] sm:$0xff]
        %v1144 = vld [vmem:[#allocation3 + $0x48] sm:$0xff]
        %v1145 = vld [vmem:[#allocation3 + $0x50] sm:$0xff]
        %v1146 = vld [vmem:[#allocation3 + $0x58] sm:$0xff]
        %v1147 = vld [vmem:[#allocation3 + $0x60] sm:$0xff]
        %v1148 = vld [vmem:[#allocation3 + $0x68] sm:$0xff]
        %v1149 = vld [vmem:[#allocation3 + $0x70] sm:$0xff]
        %v1150 = vld [vmem:[#allocation3 + $0x78] sm:$0xff]
        %v1151 = vld [vmem:[#allocation3 + $0x80] sm:$0xff]
        %v1152 = vld [vmem:[#allocation3 + $0x88] sm:$0xff]
        %s1153 = scalar_lea.vmem %s5, 8
        %v1154 = vld [vmem:[%s1153] sm:$0xff]
        %1156 = vset.pattern.permute.xlu0 0
        %1157 = vperm.xlu0 %1156, %v1154
        %v1158 = vpop.permute.xlu0 %1157
        %v1161 = vsel %vm791, %v1134, 0
        %1163 = vmatpush.msra.mxu0 0.0
        %1164 = vmatpush.msra.mxu0 0.0
        %1165 = vmatpush.msra.mxu0 0.0
        %1166 = vmatpush.msra.mxu0 0.0
        %1167 = vmatpush.msra.mxu0 0.0
        %1168 = vmatpush.msra.mxu0 0.0
        %1169 = vmatpush.msra.mxu0 0.0
        %1170 = vmatpush.msra.mxu0 %v1151
        %1171 = vmatpush.msra.mxu0 %v1149
        %1172 = vmatpush.msra.mxu0 %v1147
        %1173 = vmatpush.msra.mxu0 %v1145
        %1174 = vmatpush.msra.mxu0 %v1143
        %1175 = vmatpush.msra.mxu0 %v1141
        %1176 = vmatpush.msra.mxu0 %v1139
        %1177 = vmatpush.msra.mxu0 %v1137
        %1178 = vmatpush.msra.mxu0 %v1135
        %1179 = vmatmul.f32.gmra.mxu0 %v1161
        %v1180 = vpop.f32.mrf.mxu0
        %v1181 = vadd.f32 %v1158, %v1180
        %1182 = vdwg.mxu0
        %1183 = vmatpush.msra.mxu0 0.0
        %1184 = vmatpush.msra.mxu0 0.0
        %1185 = vmatpush.msra.mxu0 0.0
        %1186 = vmatpush.msra.mxu0 0.0
        %1187 = vmatpush.msra.mxu0 0.0
        %1188 = vmatpush.msra.mxu0 0.0
        %1189 = vmatpush.msra.mxu0 0.0
        %1190 = vmatpush.msra.mxu0 %v1152
        %1191 = vmatpush.msra.mxu0 %v1150
        %1192 = vmatpush.msra.mxu0 %v1148
        %1193 = vmatpush.msra.mxu0 %v1146
        %1194 = vmatpush.msra.mxu0 %v1144
        %1195 = vmatpush.msra.mxu0 %v1142
        %1196 = vmatpush.msra.mxu0 %v1140
        %1197 = vmatpush.msra.mxu0 %v1138
        %1198 = vmatpush.msra.mxu0 %v1136
        %1199 = vmatmul.f32.gmra.mxu0 %v1161
        %v1200 = vpop.f32.mrf.mxu0
        %v1201 = vadd.f32 %v1158, %v1200
        %1202 = vdwg.mxu0
        %v1203 = vmax.f32 %v1181, 0.0
        %v1204 = vmax.f32 %v1201, 0.0
        %v1205 = vld [vmem:[#allocation4] sm:$0xff]
        %v1206 = vld [vmem:[#allocation4 + $0x8] sm:$0xff]
        %v1207 = vld [vmem:[#allocation4 + $0x10] sm:$0xff]
        %v1208 = vld [vmem:[#allocation4 + $0x18] sm:$0xff]
        %v1209 = vld [vmem:[#allocation4 + $0x20] sm:$0xff]
        %v1210 = vld [vmem:[#allocation4 + $0x28] sm:$0xff]
        %v1211 = vld [vmem:[#allocation4 + $0x30] sm:$0xff]
        %v1212 = vld [vmem:[#allocation4 + $0x38] sm:$0xff]
        %v1213 = vld [vmem:[#allocation4 + $0x40] sm:$0xff]
        %v1214 = vld [vmem:[#allocation4 + $0x48] sm:$0xff]
        %v1215 = vld [vmem:[#allocation4 + $0x50] sm:$0xff]
        %v1216 = vld [vmem:[#allocation4 + $0x58] sm:$0xff]
        %v1217 = vld [vmem:[#allocation4 + $0x60] sm:$0xff]
        %v1218 = vld [vmem:[#allocation4 + $0x68] sm:$0xff]
        %v1219 = vld [vmem:[#allocation4 + $0x70] sm:$0xff]
        %v1220 = vld [vmem:[#allocation4 + $0x78] sm:$0xff]
        %s1221 = scalar_lea.vmem %s6, 64
        %v1222 = vld [vmem:[%s1221] sm:$0xff]
        %v1223 = vld [vmem:[%s1221 + $0x8] sm:$0xff]
        %v1224 = vld [vmem:[%s1221 + $0x10] sm:$0xff]
        %v1225 = vld [vmem:[%s1221 + $0x18] sm:$0xff]
        %v1226 = vld [vmem:[%s1221 + $0x20] sm:$0xff]
        %v1227 = vld [vmem:[%s1221 + $0x28] sm:$0xff]
        %v1228 = vld [vmem:[%s1221 + $0x30] sm:$0xff]
        %v1229 = vld [vmem:[%s1221 + $0x38] sm:$0xff]
        %v1231 = vsel %vm494, %v1222, 0
        %v1234 = vsel %vm494, %v1223, 0
        %v1237 = vsel %vm494, %v1224, 0
        %v1240 = vsel %vm494, %v1225, 0
        %v1243 = vsel %vm494, %v1226, 0
        %v1246 = vsel %vm494, %v1227, 0
        %v1249 = vsel %vm494, %v1228, 0
        %v1252 = vsel %vm494, %v1229, 0
        %1254 = vmatpush.msra.mxu0 0.0
        %1255 = vmatpush.msra.mxu0 0.0
        %1256 = vmatpush.msra.mxu0 0.0
        %1257 = vmatpush.msra.mxu0 0.0
        %1258 = vmatpush.msra.mxu0 0.0
        %1259 = vmatpush.msra.mxu0 0.0
        %1260 = vmatpush.msra.mxu0 0.0
        %1261 = vmatpush.msra.mxu0 0.0
        %1262 = vmatpush.msra.mxu0 0.0
        %1263 = vmatpush.msra.mxu0 0.0
        %1264 = vmatpush.msra.mxu0 0.0
        %1265 = vmatpush.msra.mxu0 0.0
        %1266 = vmatpush.msra.mxu0 0.0
        %1267 = vmatpush.msra.mxu0 0.0
        %1268 = vmatpush.msra.mxu0 0.0
        %1269 = vmatpush.msra.mxu0 %v1203
        %1270 = vmatmul.f32.gmra.mxu0 %v1231
        %v1271 = vpop.f32.mrf.mxu0
        %v1272 = vadd.f32 0.0, %v1271
        %1273 = vmatmul.f32.gmra.mxu0 %v1234
        %v1274 = vpop.f32.mrf.mxu0
        %v1275 = vadd.f32 0.0, %v1274
        %1276 = vmatmul.f32.gmra.mxu0 %v1237
        %v1277 = vpop.f32.mrf.mxu0
        %v1278 = vadd.f32 0.0, %v1277
        %1279 = vmatmul.f32.gmra.mxu0 %v1240
        %v1280 = vpop.f32.mrf.mxu0
        %v1281 = vadd.f32 0.0, %v1280
        %1282 = vmatmul.f32.gmra.mxu0 %v1243
        %v1283 = vpop.f32.mrf.mxu0
        %v1284 = vadd.f32 0.0, %v1283
        %1285 = vmatmul.f32.gmra.mxu0 %v1246
        %v1286 = vpop.f32.mrf.mxu0
        %v1287 = vadd.f32 0.0, %v1286
        %1288 = vmatmul.f32.gmra.mxu0 %v1249
        %v1289 = vpop.f32.mrf.mxu0
        %v1290 = vadd.f32 0.0, %v1289
        %1291 = vmatmul.f32.gmra.mxu0 %v1252
        %v1292 = vpop.f32.mrf.mxu0
        %v1293 = vadd.f32 0.0, %v1292
        %1294 = vdwg.mxu0
        %1295 = vmatpush.msra.mxu0 0.0
        %1296 = vmatpush.msra.mxu0 0.0
        %1297 = vmatpush.msra.mxu0 0.0
        %1298 = vmatpush.msra.mxu0 0.0
        %1299 = vmatpush.msra.mxu0 0.0
        %1300 = vmatpush.msra.mxu0 0.0
        %1301 = vmatpush.msra.mxu0 0.0
        %1302 = vmatpush.msra.mxu0 0.0
        %1303 = vmatpush.msra.mxu0 0.0
        %1304 = vmatpush.msra.mxu0 0.0
        %1305 = vmatpush.msra.mxu0 0.0
        %1306 = vmatpush.msra.mxu0 0.0
        %1307 = vmatpush.msra.mxu0 0.0
        %1308 = vmatpush.msra.mxu0 0.0
        %1309 = vmatpush.msra.mxu0 0.0
        %1310 = vmatpush.msra.mxu0 %v1204
        %1311 = vmatmul.f32.gmra.mxu0 %v1231
        %v1312 = vpop.f32.mrf.mxu0
        %v1313 = vadd.f32 0.0, %v1312
        %1314 = vmatmul.f32.gmra.mxu0 %v1234
        %v1315 = vpop.f32.mrf.mxu0
        %v1316 = vadd.f32 0.0, %v1315
        %1317 = vmatmul.f32.gmra.mxu0 %v1237
        %v1318 = vpop.f32.mrf.mxu0
        %v1319 = vadd.f32 0.0, %v1318
        %1320 = vmatmul.f32.gmra.mxu0 %v1240
        %v1321 = vpop.f32.mrf.mxu0
        %v1322 = vadd.f32 0.0, %v1321
        %1323 = vmatmul.f32.gmra.mxu0 %v1243
        %v1324 = vpop.f32.mrf.mxu0
        %v1325 = vadd.f32 0.0, %v1324
        %1326 = vmatmul.f32.gmra.mxu0 %v1246
        %v1327 = vpop.f32.mrf.mxu0
        %v1328 = vadd.f32 0.0, %v1327
        %1329 = vmatmul.f32.gmra.mxu0 %v1249
        %v1330 = vpop.f32.mrf.mxu0
        %v1331 = vadd.f32 0.0, %v1330
        %1332 = vmatmul.f32.gmra.mxu0 %v1252
        %v1333 = vpop.f32.mrf.mxu0
        %v1334 = vadd.f32 0.0, %v1333
        %1335 = vdwg.mxu0
        %v1336 = vadd.f32 %v1205, %v1272
        %v1337 = vadd.f32 %v1206, %v1313
        %v1338 = vadd.f32 %v1207, %v1275
        %v1339 = vadd.f32 %v1208, %v1316
        %v1340 = vadd.f32 %v1209, %v1278
        %v1341 = vadd.f32 %v1210, %v1319
        %v1342 = vadd.f32 %v1211, %v1281
        %v1343 = vadd.f32 %v1212, %v1322
        %v1344 = vadd.f32 %v1213, %v1284
        %v1345 = vadd.f32 %v1214, %v1325
        %v1346 = vadd.f32 %v1215, %v1287
        %v1347 = vadd.f32 %v1216, %v1328
        %v1348 = vadd.f32 %v1217, %v1290
        %v1349 = vadd.f32 %v1218, %v1331
        %v1350 = vadd.f32 %v1219, %v1293
        %v1351 = vadd.f32 %v1220, %v1334
        %1352 = vst [vmem:[#allocation4] sm:$0xff] %v1336
        %1353 = vst [vmem:[#allocation4 + $0x8] sm:$0xff] %v1337
        %1354 = vst [vmem:[#allocation4 + $0x10] sm:$0xff] %v1338
        %1355 = vst [vmem:[#allocation4 + $0x18] sm:$0xff] %v1339
        %1356 = vst [vmem:[#allocation4 + $0x20] sm:$0xff] %v1340
        %1357 = vst [vmem:[#allocation4 + $0x28] sm:$0xff] %v1341
        %1358 = vst [vmem:[#allocation4 + $0x30] sm:$0xff] %v1342
        %1359 = vst [vmem:[#allocation4 + $0x38] sm:$0xff] %v1343
        %1360 = vst [vmem:[#allocation4 + $0x40] sm:$0xff] %v1344
        %1361 = vst [vmem:[#allocation4 + $0x48] sm:$0xff] %v1345
        %1362 = vst [vmem:[#allocation4 + $0x50] sm:$0xff] %v1346
        %1363 = vst [vmem:[#allocation4 + $0x58] sm:$0xff] %v1347
        %1364 = vst [vmem:[#allocation4 + $0x60] sm:$0xff] %v1348
        %1365 = vst [vmem:[#allocation4 + $0x68] sm:$0xff] %v1349
        %1366 = vst [vmem:[#allocation4 + $0x70] sm:$0xff] %v1350
        %1367 = vst [vmem:[#allocation4 + $0x78] sm:$0xff] %v1351
        %v1368 = vld [vmem:[#allocation2 + $0x20] sm:$0xff]
        %v1369 = vld [vmem:[#allocation2 + $0x28] sm:$0xff]
        %v1370 = vadd.f32 %v1203, %v1368
        %v1371 = vadd.f32 %v1204, %v1369
        %1372 = vrot.lane.b32.xlu0 %v1370, 17
        %v1373 = vpop.permute.xlu0 %1372
        %1374 = vrot.lane.b32.xlu0 %v1371, 17
        %v1375 = vpop.permute.xlu0 %1374
        %v1376 = vsel %vm625, %v1373, %v1375
        %v1377 = vsel %vm625, %v1375, %v1373
        %v1378 = vld [vmem:[%s1] ss:$8 sm:$0x3]
        %v1380 = vperm.slane %v1378, 0
        %v1381 = vperm.slane %v1378, 1
        %v1384 = vmul.f32 %v1377, %v1380
        %v1385 = vmul.f32 %v1376, %v1381
        %1386 = vst [vmem:[#allocation3] sm:$0xff] %v1384
        %1387 = vst [vmem:[#allocation3 + $0x8] sm:$0xff] %v1385
        %1388 = vrot.lane.b32.xlu0 %v1370, 16
        %v1389 = vpop.permute.xlu0 %1388
        %1390 = vrot.lane.b32.xlu0 %v1371, 16
        %v1391 = vpop.permute.xlu0 %1390
        %v1392 = vsel %vm642, %v1389, %v1391
        %v1393 = vsel %vm642, %v1391, %v1389
        %v1394 = vld [vmem:[%s645] ss:$8 sm:$0x3]
        %v1396 = vperm.slane %v1394, 0
        %v1397 = vperm.slane %v1394, 1
        %v1400 = vmul.f32 %v1393, %v1396
        %v1401 = vmul.f32 %v1392, %v1397
        %1402 = vst [vmem:[#allocation3 + $0x10] sm:$0xff] %v1400
        %1403 = vst [vmem:[#allocation3 + $0x18] sm:$0xff] %v1401
        %1404 = vrot.lane.b32.xlu0 %v1370, 15
        %v1405 = vpop.permute.xlu0 %1404
        %1406 = vrot.lane.b32.xlu0 %v1371, 15
        %v1407 = vpop.permute.xlu0 %1406
        %v1408 = vsel %vm660, %v1405, %v1407
        %v1409 = vsel %vm660, %v1407, %v1405
        %v1410 = vld [vmem:[%s663] ss:$8 sm:$0x3]
        %v1412 = vperm.slane %v1410, 0
        %v1413 = vperm.slane %v1410, 1
        %v1416 = vmul.f32 %v1409, %v1412
        %v1417 = vmul.f32 %v1408, %v1413
        %1418 = vst [vmem:[#allocation3 + $0x20] sm:$0xff] %v1416
        %1419 = vst [vmem:[#allocation3 + $0x28] sm:$0xff] %v1417
        %1420 = vrot.lane.b32.xlu0 %v1370, 1
        %v1421 = vpop.permute.xlu0 %1420
        %1422 = vrot.lane.b32.xlu0 %v1371, 1
        %v1423 = vpop.permute.xlu0 %1422
        %v1424 = vsel %vm678, %v1421, %v1423
        %v1425 = vsel %vm678, %v1423, %v1421
        %v1426 = vld [vmem:[%s681] ss:$8 sm:$0x3]
        %v1428 = vperm.slane %v1426, 0
        %v1429 = vperm.slane %v1426, 1
        %v1432 = vmul.f32 %v1425, %v1428
        %v1433 = vmul.f32 %v1424, %v1429
        %1434 = vst [vmem:[#allocation3 + $0x30] sm:$0xff] %v1432
        %1435 = vst [vmem:[#allocation3 + $0x38] sm:$0xff] %v1433
        %1436 = vst [vmem:[#allocation3 + $0x40] sm:$0xff] %v1370
        %1437 = vst [vmem:[#allocation3 + $0x48] sm:$0xff] %v1371
        %1438 = vrot.lane.b32.xlu0 %v1370, 127
        %v1439 = vpop.permute.xlu0 %1438
        %1440 = vrot.lane.b32.xlu0 %v1371, 127
        %v1441 = vpop.permute.xlu0 %1440
        %v1442 = vsel %vm698, %v1439, %v1441
        %v1443 = vsel %vm698, %v1441, %v1439
        %v1444 = vld [vmem:[%s701] ss:$8 sm:$0x3]
        %v1446 = vperm.slane %v1444, 0
        %v1447 = vperm.slane %v1444, 1
        %v1450 = vmul.f32 %v1442, %v1446
        %v1451 = vmul.f32 %v1443, %v1447
        %1452 = vst [vmem:[#allocation3 + $0x50] sm:$0xff] %v1450
        %1453 = vst [vmem:[#allocation3 + $0x58] sm:$0xff] %v1451
        %1454 = vrot.lane.b32.xlu0 %v1370, 113
        %v1455 = vpop.permute.xlu0 %1454
        %1456 = vrot.lane.b32.xlu0 %v1371, 113
        %v1457 = vpop.permute.xlu0 %1456
        %v1458 = vsel %vm716, %v1455, %v1457
        %v1459 = vsel %vm716, %v1457, %v1455
        %v1460 = vld [vmem:[%s719] ss:$8 sm:$0x3]
        %v1462 = vperm.slane %v1460, 0
        %v1463 = vperm.slane %v1460, 1
        %v1466 = vmul.f32 %v1458, %v1462
        %v1467 = vmul.f32 %v1459, %v1463
        %1468 = vst [vmem:[#allocation3 + $0x60] sm:$0xff] %v1466
        %1469 = vst [vmem:[#allocation3 + $0x68] sm:$0xff] %v1467
        %1470 = vrot.lane.b32.xlu0 %v1370, 112
        %v1471 = vpop.permute.xlu0 %1470
        %1472 = vrot.lane.b32.xlu0 %v1371, 112
        %v1473 = vpop.permute.xlu0 %1472
        %v1474 = vsel %vm734, %v1471, %v1473
        %v1475 = vsel %vm734, %v1473, %v1471
        %v1476 = vld [vmem:[%s737] ss:$8 sm:$0x3]
        %v1478 = vperm.slane %v1476, 0
        %v1479 = vperm.slane %v1476, 1
        %v1482 = vmul.f32 %v1474, %v1478
        %v1483 = vmul.f32 %v1475, %v1479
        %1484 = vst [vmem:[#allocation3 + $0x70] sm:$0xff] %v1482
        %1485 = vst [vmem:[#allocation3 + $0x78] sm:$0xff] %v1483
        %1486 = vrot.lane.b32.xlu0 %v1370, 111
        %v1487 = vpop.permute.xlu0 %1486
        %1488 = vrot.lane.b32.xlu0 %v1371, 111
        %v1489 = vpop.permute.xlu0 %1488
        %v1490 = vsel %vm752, %v1487, %v1489
        %v1491 = vsel %vm752, %v1489, %v1487
        %v1492 = vld [vmem:[%s755] ss:$8 sm:$0x3]
        %v1494 = vperm.slane %v1492, 0
        %v1495 = vperm.slane %v1492, 1
        %v1498 = vmul.f32 %v1490, %v1494
        %v1499 = vmul.f32 %v1491, %v1495
        %1500 = vst [vmem:[#allocation3 + $0x80] sm:$0xff] %v1498
        %1501 = vst [vmem:[#allocation3 + $0x88] sm:$0xff] %v1499
        %s1502 = scalar_lea.vmem %s4, 16
        %v1503 = vld [vmem:[%s1502] sm:$0xff]
        %v1504 = vld [vmem:[#allocation3] sm:$0xff]
        %v1505 = vld [vmem:[#allocation3 + $0x8] sm:$0xff]
        %v1506 = vld [vmem:[#allocation3 + $0x10] sm:$0xff]
        %v1507 = vld [vmem:[#allocation3 + $0x18] sm:$0xff]
        %v1508 = vld [vmem:[#allocation3 + $0x20] sm:$0xff]
        %v1509 = vld [vmem:[#allocation3 + $0x28] sm:$0xff]
        %v1510 = vld [vmem:[#allocation3 + $0x30] sm:$0xff]
        %v1511 = vld [vmem:[#allocation3 + $0x38] sm:$0xff]
        %v1512 = vld [vmem:[#allocation3 + $0x40] sm:$0xff]
        %v1513 = vld [vmem:[#allocation3 + $0x48] sm:$0xff]
        %v1514 = vld [vmem:[#allocation3 + $0x50] sm:$0xff]
        %v1515 = vld [vmem:[#allocation3 + $0x58] sm:$0xff]
        %v1516 = vld [vmem:[#allocation3 + $0x60] sm:$0xff]
        %v1517 = vld [vmem:[#allocation3 + $0x68] sm:$0xff]
        %v1518 = vld [vmem:[#allocation3 + $0x70] sm:$0xff]
        %v1519 = vld [vmem:[#allocation3 + $0x78] sm:$0xff]
        %v1520 = vld [vmem:[#allocation3 + $0x80] sm:$0xff]
        %v1521 = vld [vmem:[#allocation3 + $0x88] sm:$0xff]
        %s1522 = scalar_lea.vmem %s5, 16
        %v1523 = vld [vmem:[%s1522] sm:$0xff]
        %1525 = vset.pattern.permute.xlu0 0
        %1526 = vperm.xlu0 %1525, %v1523
        %v1527 = vpop.permute.xlu0 %1526
        %v1530 = vsel %vm791, %v1503, 0
        %1532 = vmatpush.msra.mxu0 0.0
        %1533 = vmatpush.msra.mxu0 0.0
        %1534 = vmatpush.msra.mxu0 0.0
        %1535 = vmatpush.msra.mxu0 0.0
        %1536 = vmatpush.msra.mxu0 0.0
        %1537 = vmatpush.msra.mxu0 0.0
        %1538 = vmatpush.msra.mxu0 0.0
        %1539 = vmatpush.msra.mxu0 %v1520
        %1540 = vmatpush.msra.mxu0 %v1518
        %1541 = vmatpush.msra.mxu0 %v1516
        %1542 = vmatpush.msra.mxu0 %v1514
        %1543 = vmatpush.msra.mxu0 %v1512
        %1544 = vmatpush.msra.mxu0 %v1510
        %1545 = vmatpush.msra.mxu0 %v1508
        %1546 = vmatpush.msra.mxu0 %v1506
        %1547 = vmatpush.msra.mxu0 %v1504
        %1548 = vmatmul.f32.gmra.mxu0 %v1530
        %v1549 = vpop.f32.mrf.mxu0
        %v1550 = vadd.f32 %v1527, %v1549
        %1551 = vdwg.mxu0
        %1552 = vmatpush.msra.mxu0 0.0
        %1553 = vmatpush.msra.mxu0 0.0
        %1554 = vmatpush.msra.mxu0 0.0
        %1555 = vmatpush.msra.mxu0 0.0
        %1556 = vmatpush.msra.mxu0 0.0
        %1557 = vmatpush.msra.mxu0 0.0
        %1558 = vmatpush.msra.mxu0 0.0
        %1559 = vmatpush.msra.mxu0 %v1521
        %1560 = vmatpush.msra.mxu0 %v1519
        %1561 = vmatpush.msra.mxu0 %v1517
        %1562 = vmatpush.msra.mxu0 %v1515
        %1563 = vmatpush.msra.mxu0 %v1513
        %1564 = vmatpush.msra.mxu0 %v1511
        %1565 = vmatpush.msra.mxu0 %v1509
        %1566 = vmatpush.msra.mxu0 %v1507
        %1567 = vmatpush.msra.mxu0 %v1505
        %1568 = vmatmul.f32.gmra.mxu0 %v1530
        %v1569 = vpop.f32.mrf.mxu0
        %v1570 = vadd.f32 %v1527, %v1569
        %1571 = vdwg.mxu0
        %v1572 = vmax.f32 %v1550, 0.0
        %v1573 = vmax.f32 %v1570, 0.0
        %v1574 = vld [vmem:[#allocation4] sm:$0xff]
        %v1575 = vld [vmem:[#allocation4 + $0x8] sm:$0xff]
        %v1576 = vld [vmem:[#allocation4 + $0x10] sm:$0xff]
        %v1577 = vld [vmem:[#allocation4 + $0x18] sm:$0xff]
        %v1578 = vld [vmem:[#allocation4 + $0x20] sm:$0xff]
        %v1579 = vld [vmem:[#allocation4 + $0x28] sm:$0xff]
        %v1580 = vld [vmem:[#allocation4 + $0x30] sm:$0xff]
        %v1581 = vld [vmem:[#allocation4 + $0x38] sm:$0xff]
        %v1582 = vld [vmem:[#allocation4 + $0x40] sm:$0xff]
        %v1583 = vld [vmem:[#allocation4 + $0x48] sm:$0xff]
        %v1584 = vld [vmem:[#allocation4 + $0x50] sm:$0xff]
        %v1585 = vld [vmem:[#allocation4 + $0x58] sm:$0xff]
        %v1586 = vld [vmem:[#allocation4 + $0x60] sm:$0xff]
        %v1587 = vld [vmem:[#allocation4 + $0x68] sm:$0xff]
        %v1588 = vld [vmem:[#allocation4 + $0x70] sm:$0xff]
        %v1589 = vld [vmem:[#allocation4 + $0x78] sm:$0xff]
        %s1590 = scalar_lea.vmem %s6, 128
        %v1591 = vld [vmem:[%s1590] sm:$0xff]
        %v1592 = vld [vmem:[%s1590 + $0x8] sm:$0xff]
        %v1593 = vld [vmem:[%s1590 + $0x10] sm:$0xff]
        %v1594 = vld [vmem:[%s1590 + $0x18] sm:$0xff]
        %v1595 = vld [vmem:[%s1590 + $0x20] sm:$0xff]
        %v1596 = vld [vmem:[%s1590 + $0x28] sm:$0xff]
        %v1597 = vld [vmem:[%s1590 + $0x30] sm:$0xff]
        %v1598 = vld [vmem:[%s1590 + $0x38] sm:$0xff]
        %v1600 = vsel %vm494, %v1591, 0
        %v1603 = vsel %vm494, %v1592, 0
        %v1606 = vsel %vm494, %v1593, 0
        %v1609 = vsel %vm494, %v1594, 0
        %v1612 = vsel %vm494, %v1595, 0
        %v1615 = vsel %vm494, %v1596, 0
        %v1618 = vsel %vm494, %v1597, 0
        %v1621 = vsel %vm494, %v1598, 0
        %1623 = vmatpush.msra.mxu0 0.0
        %1624 = vmatpush.msra.mxu0 0.0
        %1625 = vmatpush.msra.mxu0 0.0
        %1626 = vmatpush.msra.mxu0 0.0
        %1627 = vmatpush.msra.mxu0 0.0
        %1628 = vmatpush.msra.mxu0 0.0
        %1629 = vmatpush.msra.mxu0 0.0
        %1630 = vmatpush.msra.mxu0 0.0
        %1631 = vmatpush.msra.mxu0 0.0
        %1632 = vmatpush.msra.mxu0 0.0
        %1633 = vmatpush.msra.mxu0 0.0
        %1634 = vmatpush.msra.mxu0 0.0
        %1635 = vmatpush.msra.mxu0 0.0
        %1636 = vmatpush.msra.mxu0 0.0
        %1637 = vmatpush.msra.mxu0 0.0
        %1638 = vmatpush.msra.mxu0 %v1572
        %1639 = vmatmul.f32.gmra.mxu0 %v1600
        %v1640 = vpop.f32.mrf.mxu0
        %v1641 = vadd.f32 0.0, %v1640
        %1642 = vmatmul.f32.gmra.mxu0 %v1603
        %v1643 = vpop.f32.mrf.mxu0
        %v1644 = vadd.f32 0.0, %v1643
        %1645 = vmatmul.f32.gmra.mxu0 %v1606
        %v1646 = vpop.f32.mrf.mxu0
        %v1647 = vadd.f32 0.0, %v1646
        %1648 = vmatmul.f32.gmra.mxu0 %v1609
        %v1649 = vpop.f32.mrf.mxu0
        %v1650 = vadd.f32 0.0, %v1649
        %1651 = vmatmul.f32.gmra.mxu0 %v1612
        %v1652 = vpop.f32.mrf.mxu0
        %v1653 = vadd.f32 0.0, %v1652
        %1654 = vmatmul.f32.gmra.mxu0 %v1615
        %v1655 = vpop.f32.mrf.mxu0
        %v1656 = vadd.f32 0.0, %v1655
        %1657 = vmatmul.f32.gmra.mxu0 %v1618
        %v1658 = vpop.f32.mrf.mxu0
        %v1659 = vadd.f32 0.0, %v1658
        %1660 = vmatmul.f32.gmra.mxu0 %v1621
        %v1661 = vpop.f32.mrf.mxu0
        %v1662 = vadd.f32 0.0, %v1661
        %1663 = vdwg.mxu0
        %1664 = vmatpush.msra.mxu0 0.0
        %1665 = vmatpush.msra.mxu0 0.0
        %1666 = vmatpush.msra.mxu0 0.0
        %1667 = vmatpush.msra.mxu0 0.0
        %1668 = vmatpush.msra.mxu0 0.0
        %1669 = vmatpush.msra.mxu0 0.0
        %1670 = vmatpush.msra.mxu0 0.0
        %1671 = vmatpush.msra.mxu0 0.0
        %1672 = vmatpush.msra.mxu0 0.0
        %1673 = vmatpush.msra.mxu0 0.0
        %1674 = vmatpush.msra.mxu0 0.0
        %1675 = vmatpush.msra.mxu0 0.0
        %1676 = vmatpush.msra.mxu0 0.0
        %1677 = vmatpush.msra.mxu0 0.0
        %1678 = vmatpush.msra.mxu0 0.0
        %1679 = vmatpush.msra.mxu0 %v1573
        %1680 = vmatmul.f32.gmra.mxu0 %v1600
        %v1681 = vpop.f32.mrf.mxu0
        %v1682 = vadd.f32 0.0, %v1681
        %1683 = vmatmul.f32.gmra.mxu0 %v1603
        %v1684 = vpop.f32.mrf.mxu0
        %v1685 = vadd.f32 0.0, %v1684
        %1686 = vmatmul.f32.gmra.mxu0 %v1606
        %v1687 = vpop.f32.mrf.mxu0
        %v1688 = vadd.f32 0.0, %v1687
        %1689 = vmatmul.f32.gmra.mxu0 %v1609
        %v1690 = vpop.f32.mrf.mxu0
        %v1691 = vadd.f32 0.0, %v1690
        %1692 = vmatmul.f32.gmra.mxu0 %v1612
        %v1693 = vpop.f32.mrf.mxu0
        %v1694 = vadd.f32 0.0, %v1693
        %1695 = vmatmul.f32.gmra.mxu0 %v1615
        %v1696 = vpop.f32.mrf.mxu0
        %v1697 = vadd.f32 0.0, %v1696
        %1698 = vmatmul.f32.gmra.mxu0 %v1618
        %v1699 = vpop.f32.mrf.mxu0
        %v1700 = vadd.f32 0.0, %v1699
        %1701 = vmatmul.f32.gmra.mxu0 %v1621
        %v1702 = vpop.f32.mrf.mxu0
        %v1703 = vadd.f32 0.0, %v1702
        %1704 = vdwg.mxu0
        %v1705 = vadd.f32 %v1574, %v1641
        %v1706 = vadd.f32 %v1575, %v1682
        %v1707 = vadd.f32 %v1576, %v1644
        %v1708 = vadd.f32 %v1577, %v1685
        %v1709 = vadd.f32 %v1578, %v1647
        %v1710 = vadd.f32 %v1579, %v1688
        %v1711 = vadd.f32 %v1580, %v1650
        %v1712 = vadd.f32 %v1581, %v1691
        %v1713 = vadd.f32 %v1582, %v1653
        %v1714 = vadd.f32 %v1583, %v1694
        %v1715 = vadd.f32 %v1584, %v1656
        %v1716 = vadd.f32 %v1585, %v1697
        %v1717 = vadd.f32 %v1586, %v1659
        %v1718 = vadd.f32 %v1587, %v1700
        %v1719 = vadd.f32 %v1588, %v1662
        %v1720 = vadd.f32 %v1589, %v1703
        %1721 = vst [vmem:[#allocation4] sm:$0xff] %v1705
        %1722 = vst [vmem:[#allocation4 + $0x8] sm:$0xff] %v1706
        %1723 = vst [vmem:[#allocation4 + $0x10] sm:$0xff] %v1707
        %1724 = vst [vmem:[#allocation4 + $0x18] sm:$0xff] %v1708
        %1725 = vst [vmem:[#allocation4 + $0x20] sm:$0xff] %v1709
        %1726 = vst [vmem:[#allocation4 + $0x28] sm:$0xff] %v1710
        %1727 = vst [vmem:[#allocation4 + $0x30] sm:$0xff] %v1711
        %1728 = vst [vmem:[#allocation4 + $0x38] sm:$0xff] %v1712
        %1729 = vst [vmem:[#allocation4 + $0x40] sm:$0xff] %v1713
        %1730 = vst [vmem:[#allocation4 + $0x48] sm:$0xff] %v1714
        %1731 = vst [vmem:[#allocation4 + $0x50] sm:$0xff] %v1715
        %1732 = vst [vmem:[#allocation4 + $0x58] sm:$0xff] %v1716
        %1733 = vst [vmem:[#allocation4 + $0x60] sm:$0xff] %v1717
        %1734 = vst [vmem:[#allocation4 + $0x68] sm:$0xff] %v1718
        %1735 = vst [vmem:[#allocation4 + $0x70] sm:$0xff] %v1719
        %1736 = vst [vmem:[#allocation4 + $0x78] sm:$0xff] %v1720
        %v1737 = vld [vmem:[#allocation4] sm:$0xff]
        %v1738 = vld [vmem:[#allocation4 + $0x8] sm:$0xff]
        %v1739 = vld [vmem:[#allocation4 + $0x10] sm:$0xff]
        %v1740 = vld [vmem:[#allocation4 + $0x18] sm:$0xff]
        %v1741 = vld [vmem:[#allocation4 + $0x20] sm:$0xff]
        %v1742 = vld [vmem:[#allocation4 + $0x28] sm:$0xff]
        %v1743 = vld [vmem:[#allocation4 + $0x30] sm:$0xff]
        %v1744 = vld [vmem:[#allocation4 + $0x38] sm:$0xff]
        %v1745 = vld [vmem:[#allocation4 + $0x40] sm:$0xff]
        %v1746 = vld [vmem:[#allocation4 + $0x48] sm:$0xff]
        %v1747 = vld [vmem:[#allocation4 + $0x50] sm:$0xff]
        %v1748 = vld [vmem:[#allocation4 + $0x58] sm:$0xff]
        %v1749 = vld [vmem:[#allocation4 + $0x60] sm:$0xff]
        %v1750 = vld [vmem:[#allocation4 + $0x68] sm:$0xff]
        %v1751 = vld [vmem:[#allocation4 + $0x70] sm:$0xff]
        %v1752 = vld [vmem:[#allocation4 + $0x78] sm:$0xff]
        %v1753 = vld [vmem:[%s7] sm:$0xff]
        %v1754 = vld [vmem:[%s7 + $0x8] sm:$0xff]
        %v1755 = vld [vmem:[%s7 + $0x10] sm:$0xff]
        %v1756 = vld [vmem:[%s7 + $0x18] sm:$0xff]
        %v1757 = vld [vmem:[%s7 + $0x20] sm:$0xff]
        %v1758 = vld [vmem:[%s7 + $0x28] sm:$0xff]
        %v1759 = vld [vmem:[%s7 + $0x30] sm:$0xff]
        %v1760 = vld [vmem:[%s7 + $0x38] sm:$0xff]
        %1762 = vset.pattern.permute.xlu0 0
        %1763 = vperm.xlu0 %1762, %v1753
        %v1764 = vpop.permute.xlu0 %1763
        %1767 = vset.pattern.permute.xlu0 0
        %1768 = vperm.xlu0 %1767, %v1754
        %v1769 = vpop.permute.xlu0 %1768
        %1772 = vset.pattern.permute.xlu0 0
        %1773 = vperm.xlu0 %1772, %v1755
        %v1774 = vpop.permute.xlu0 %1773
        %1777 = vset.pattern.permute.xlu0 0
        %1778 = vperm.xlu0 %1777, %v1756
        %v1779 = vpop.permute.xlu0 %1778
        %1782 = vset.pattern.permute.xlu0 0
        %1783 = vperm.xlu0 %1782, %v1757
        %v1784 = vpop.permute.xlu0 %1783
        %1787 = vset.pattern.permute.xlu0 0
        %1788 = vperm.xlu0 %1787, %v1758
        %v1789 = vpop.permute.xlu0 %1788
        %1792 = vset.pattern.permute.xlu0 0
        %1793 = vperm.xlu0 %1792, %v1759
        %v1794 = vpop.permute.xlu0 %1793
        %1797 = vset.pattern.permute.xlu0 0
        %1798 = vperm.xlu0 %1797, %v1760
        %v1799 = vpop.permute.xlu0 %1798
        %v1801 = vadd.f32 %v1737, %v1764
        %v1802 = vadd.f32 %v1738, %v1764
        %v1803 = vadd.f32 %v1739, %v1769
        %v1804 = vadd.f32 %v1740, %v1769
        %v1805 = vadd.f32 %v1741, %v1774
        %v1806 = vadd.f32 %v1742, %v1774
        %v1807 = vadd.f32 %v1743, %v1779
        %v1808 = vadd.f32 %v1744, %v1779
        %v1809 = vadd.f32 %v1745, %v1784
        %v1810 = vadd.f32 %v1746, %v1784
        %v1811 = vadd.f32 %v1747, %v1789
        %v1812 = vadd.f32 %v1748, %v1789
        %v1813 = vadd.f32 %v1749, %v1794
        %v1814 = vadd.f32 %v1750, %v1794
        %v1815 = vadd.f32 %v1751, %v1799
        %v1816 = vadd.f32 %v1752, %v1799
        %v1817 = vld [vmem:[%s320] sm:$0xff]
        %v1818 = vld [vmem:[%s320 + $0x8] sm:$0xff]
        %v1819 = vld [vmem:[%s320 + $0x10] sm:$0xff]
        %v1820 = vld [vmem:[%s320 + $0x18] sm:$0xff]
        %v1821 = vld [vmem:[%s320 + $0x20] sm:$0xff]
        %v1822 = vld [vmem:[%s320 + $0x28] sm:$0xff]
        %v1823 = vld [vmem:[%s320 + $0x30] sm:$0xff]
        %v1824 = vld [vmem:[%s320 + $0x38] sm:$0xff]
        %v1825 = vld [vmem:[%s320 + $0x40] sm:$0xff]
        %v1826 = vld [vmem:[%s320 + $0x48] sm:$0xff]
        %v1827 = vld [vmem:[%s320 + $0x50] sm:$0xff]
        %v1828 = vld [vmem:[%s320 + $0x58] sm:$0xff]
        %v1829 = vld [vmem:[%s320 + $0x60] sm:$0xff]
        %v1830 = vld [vmem:[%s320 + $0x68] sm:$0xff]
        %v1831 = vld [vmem:[%s320 + $0x70] sm:$0xff]
        %v1832 = vld [vmem:[%s320 + $0x78] sm:$0xff]
        %v1833 = vadd.f32 %v1801, %v1817
        %v1834 = vadd.f32 %v1802, %v1818
        %v1835 = vadd.f32 %v1803, %v1819
        %v1836 = vadd.f32 %v1804, %v1820
        %v1837 = vadd.f32 %v1805, %v1821
        %v1838 = vadd.f32 %v1806, %v1822
        %v1839 = vadd.f32 %v1807, %v1823
        %v1840 = vadd.f32 %v1808, %v1824
        %v1841 = vadd.f32 %v1809, %v1825
        %v1842 = vadd.f32 %v1810, %v1826
        %v1843 = vadd.f32 %v1811, %v1827
        %v1844 = vadd.f32 %v1812, %v1828
        %v1845 = vadd.f32 %v1813, %v1829
        %v1846 = vadd.f32 %v1814, %v1830
        %v1847 = vadd.f32 %v1815, %v1831
        %v1848 = vadd.f32 %v1816, %v1832
        %v1849 = vmax.f32 %v1833, 0.0
        %v1850 = vmax.f32 %v1834, 0.0
        %v1851 = vmax.f32 %v1835, 0.0
        %v1852 = vmax.f32 %v1836, 0.0
        %v1853 = vmax.f32 %v1837, 0.0
        %v1854 = vmax.f32 %v1838, 0.0
        %v1855 = vmax.f32 %v1839, 0.0
        %v1856 = vmax.f32 %v1840, 0.0
        %v1857 = vmax.f32 %v1841, 0.0
        %v1858 = vmax.f32 %v1842, 0.0
        %v1859 = vmax.f32 %v1843, 0.0
        %v1860 = vmax.f32 %v1844, 0.0
        %v1861 = vmax.f32 %v1845, 0.0
        %v1862 = vmax.f32 %v1846, 0.0
        %v1863 = vmax.f32 %v1847, 0.0
        %v1864 = vmax.f32 %v1848, 0.0
        %1865 = vst [vmem:[%s349] sm:$0xff] %v1849
        %1866 = vst [vmem:[%s349 + $0x8] sm:$0xff] %v1850
        %1867 = vst [vmem:[%s349 + $0x10] sm:$0xff] %v1851
        %1868 = vst [vmem:[%s349 + $0x18] sm:$0xff] %v1852
        %1869 = vst [vmem:[%s349 + $0x20] sm:$0xff] %v1853
        %1870 = vst [vmem:[%s349 + $0x28] sm:$0xff] %v1854
        %1871 = vst [vmem:[%s349 + $0x30] sm:$0xff] %v1855
        %1872 = vst [vmem:[%s349 + $0x38] sm:$0xff] %v1856
        %1873 = vst [vmem:[%s349 + $0x40] sm:$0xff] %v1857
        %1874 = vst [vmem:[%s349 + $0x48] sm:$0xff] %v1858
        %1875 = vst [vmem:[%s349 + $0x50] sm:$0xff] %v1859
        %1876 = vst [vmem:[%s349 + $0x58] sm:$0xff] %v1860
        %1877 = vst [vmem:[%s349 + $0x60] sm:$0xff] %v1861
        %1878 = vst [vmem:[%s349 + $0x68] sm:$0xff] %v1862
        %1879 = vst [vmem:[%s349 + $0x70] sm:$0xff] %v1863
        %1880 = vst [vmem:[%s349 + $0x78] sm:$0xff] %v1864
        %s1881 = sand.u32 %s200, 1
        %s1882 = sand.u32 %s200, 1
        %s1883 = smul.addr %s1882, 128
        %s1884 = scalar_lea.vmem [#allocation6], %s1883
        // Predicated region
        $region76: #{bottle2neck_forward.1} parent=70 // pred_check
          %p1885 = pneg %p210
        $region77: #{bottle2neck_forward.1} parent=70 // pred_check_branch
          %1887 = sbr.rel (%p1885) target = $region79
        $region78: #{bottle2neck_forward.1} parent=70 // pred_region
          %s1888 = smul.u32 2, %s19
          %s1889 = smul.addr %s1888, 8
          %s1890 = scalar_lea.vmem %s8, %s1889
          // Predicated region
          $region80: #{bottle2neck_forward.1} parent=78 // pred_check
            _
          $region81: #{bottle2neck_forward.1} parent=78 // pred_check_branch
            %1892 = sbr.rel (0) target = $region83
          $region82: #{bottle2neck_forward.1} parent=78 // pred_region
            // Predicated region
            $region84: #{bottle2neck_forward.1} parent=82 // pred_check
              _
            $region85: #{bottle2neck_forward.1} parent=82 // pred_check_branch
              %1894 = sbr.rel (0) target = $region87
            $region86: #{bottle2neck_forward.1} parent=82 // pred_region
              loop: start=0, step=1, limit=1
              $region88: #{bottle2neck_forward.1} parent=86 // loop_pre_header
                _
              $region89: #{bottle2neck_forward.1} parent=86 // loop_header
                %s1896 = sphi 0, %s1900
                %p1897 = scmp.ge.s32.totalorder %s1896, 1
                %s1901 = sphi %s1884, %s1884
                %s1902 = sphi %s1890, %s1890
              $region90: #{bottle2neck_forward.1} parent=86 // loop_header_branch
                %1899 = sbr.rel (%p1897) target = $region94
              $region91: #{bottle2neck_forward.1} parent=86 // loop_body
                %v1903 = vld [vmem:[%s1901] sm:$0xff]
                %1904 = vst [vmem:[%s1902] sm:$0xff] %v1903
                %v1905 = vld [vmem:[%s1901 + $0x8] sm:$0xff]
                %1906 = vst [vmem:[%s1902 + $0x8] sm:$0xff] %v1905
                %v1907 = vld [vmem:[%s1901 + $0x10] sm:$0xff]
                %1908 = vst [vmem:[%s1902 + $0x20] sm:$0xff] %v1907
                %v1909 = vld [vmem:[%s1901 + $0x18] sm:$0xff]
                %1910 = vst [vmem:[%s1902 + $0x28] sm:$0xff] %v1909
                %v1911 = vld [vmem:[%s1901 + $0x20] sm:$0xff]
                %1912 = vst [vmem:[%s1902 + $0x40] sm:$0xff] %v1911
                %v1913 = vld [vmem:[%s1901 + $0x28] sm:$0xff]
                %1914 = vst [vmem:[%s1902 + $0x48] sm:$0xff] %v1913
                %v1915 = vld [vmem:[%s1901 + $0x30] sm:$0xff]
                %1916 = vst [vmem:[%s1902 + $0x60] sm:$0xff] %v1915
                %v1917 = vld [vmem:[%s1901 + $0x38] sm:$0xff]
                %1918 = vst [vmem:[%s1902 + $0x68] sm:$0xff] %v1917
                %v1919 = vld [vmem:[%s1901 + $0x40] sm:$0xff]
                %1920 = vst [vmem:[%s1902 + $0x80] sm:$0xff] %v1919
                %v1921 = vld [vmem:[%s1901 + $0x48] sm:$0xff]
                %1922 = vst [vmem:[%s1902 + $0x88] sm:$0xff] %v1921
                %v1923 = vld [vmem:[%s1901 + $0x50] sm:$0xff]
                %1924 = vst [vmem:[%s1902 + $0xa0] sm:$0xff] %v1923
                %v1925 = vld [vmem:[%s1901 + $0x58] sm:$0xff]
                %1926 = vst [vmem:[%s1902 + $0xa8] sm:$0xff] %v1925
                %v1927 = vld [vmem:[%s1901 + $0x60] sm:$0xff]
                %1928 = vst [vmem:[%s1902 + $0xc0] sm:$0xff] %v1927
                %v1929 = vld [vmem:[%s1901 + $0x68] sm:$0xff]
                %1930 = vst [vmem:[%s1902 + $0xc8] sm:$0xff] %v1929
                %v1931 = vld [vmem:[%s1901 + $0x70] sm:$0xff]
                %1932 = vst [vmem:[%s1902 + $0xe0] sm:$0xff] %v1931
                %v1933 = vld [vmem:[%s1901 + $0x78] sm:$0xff]
                %1934 = vst [vmem:[%s1902 + $0xe8] sm:$0xff] %v1933
              $region92: #{bottle2neck_forward.1} parent=86 // loop_footer
                %s1900 = sadd.s32 1, %s1896
              $region93: #{bottle2neck_forward.1} parent=86 // loop_footer_branch
                %1895 = sbr.rel target = $region89
              $region94: #{bottle2neck_forward.1} parent=86 // loop_exit
                _
            $region87: #{bottle2neck_forward.1} parent=82 // pred_fallthru
              _
            // Predicated region
            $region95: #{bottle2neck_forward.1} parent=82 // pred_check
              _
            $region96: #{bottle2neck_forward.1} parent=82 // pred_check_branch
              %1936 = sbr.rel target = $region98
            $region97: #{bottle2neck_forward.1} parent=82 // pred_region
              _
            $region98: #{bottle2neck_forward.1} parent=82 // pred_fallthru
              _
          $region83: #{bottle2neck_forward.1} parent=78 // pred_fallthru
            _
          %1937 = vnop
        $region79: #{bottle2neck_forward.1} parent=70 // pred_fallthru
          _
      $region71: #{bottle2neck_forward.1} parent=5 // pred_fallthru
        _
      %p1938 = scmp.le.s32.totalorder 2, %s14
      // Predicated region
      $region99: #{bottle2neck_forward.1} parent=5 // pred_check
        %p1939 = pneg %p1938
      $region100: #{bottle2neck_forward.1} parent=5 // pred_check_branch
        %1941 = sbr.rel (%p1939) target = $region102
      $region101: #{bottle2neck_forward.1} parent=5 // pred_region
        %s1942 = ssub.s32 %s14, 2
        // Predicated region
        $region103: #{bottle2neck_forward.1} parent=101 // pred_check
          %p1943 = pneg %p216
        $region104: #{bottle2neck_forward.1} parent=101 // pred_check_branch
          %1945 = sbr.rel (%p1943) target = $region106
        $region105: #{bottle2neck_forward.1} parent=101 // pred_region
          %s1946 = sand.u32 %s201, 1
          %s1947 = sand.u32 %s201, 1
          %s1948 = smul.addr %s1947, 128
          %s1949 = scalar_lea.vmem [#allocation6], %s1948
        $region106: #{bottle2neck_forward.1} parent=101 // pred_fallthru
          _
      $region102: #{bottle2neck_forward.1} parent=5 // pred_fallthru
        _
    $region6: #{bottle2neck_forward.1} parent=1 // loop_footer
      %s18 = sadd.s32 1, %s14
    $region7: #{bottle2neck_forward.1} parent=1 // loop_footer_branch
      %13 = sbr.rel target = $region3
    $region8: #{bottle2neck_forward.1} parent=1 // loop_exit
      _

</llo_original>
